<compile_context>
chip_gen: v5e
topology: v5e:2x2
jax: 0.10.0
libtpu: 0.0.40
codegen_flags: <defaults>
</compile_context>

<pallas_src>
import jax
import jax.numpy as jnp
from jax.experimental import pallas as pl
from jax.experimental.pallas import tpu as pltpu

VMEM = pltpu.MemorySpace.VMEM
SMEM = pltpu.MemorySpace.SMEM

TEMP = 4.0
EPS = 1e-7
SOD_W = (1.0, 1.0, 0.5, 0.25, 0.125)     # loss1_1 + loss1_2 + loss1_3/2 + loss1_4/4 + loss1_5/8
KD_W = (1.0, 0.5, 0.25, 0.125, 0.0625)   # KL1 + KL2/2 + KL3/4 + KL4/8 + KL5/16


def _interp_matrix(dst, src):
    """1-D bilinear (align_corners=True) resampling matrix, shape (dst, src)."""
    if dst == 1:
        pos = jnp.zeros((1,), jnp.float32)
    else:
        pos = jnp.arange(dst, dtype=jnp.float32) * (float(src - 1) / float(dst - 1))
    i0 = jnp.clip(jnp.floor(pos).astype(jnp.int32), 0, src - 1)
    i1 = jnp.clip(i0 + 1, 0, src - 1)
    w1 = pos - i0.astype(jnp.float32)
    w0 = 1.0 - w1
    return (jax.nn.one_hot(i0, src, dtype=jnp.float32) * w0[:, None]
            + jax.nn.one_hot(i1, src, dtype=jnp.float32) * w1[:, None])


# ---------------------------------------------------------------------------
# Fused training-forward kernel: heads -> bilinear upsample -> SOD + KD losses.
# ---------------------------------------------------------------------------
def _fused_train_kernel(xs_ref, xt_ref, wsb_ref, bsb_ref, wtb_ref, btb_ref,
                        mask_ref, r_ref, w_ref, o_sod_ref, o_kd_ref):
    # xs_ref  : (B*C, Pl)  student input, NCHW flattened (free reshape)
    # xt_ref  : (B*C, Ph)  teacher input
    # wsb_ref : (N, B*C)   block-diag student head weights, N = B*S_pad, rows n=b*S+s
    # bsb_ref : (N, 1)
    # wtb_ref : (N, B*C)   block-diag teacher head weights
    # btb_ref : (N, 1)
    # mask_ref: (B, Pl)    labels (broadcast across stages in-kernel)
    # r_ref   : (Pl, Ph)   kron(Rh^T, Rw^T) bilinear (align_corners) upsample matrix
    # w_ref   : (N, 2)     per-row loss weights: [:,0] = SOD_W[s]/B, [:,1] = KD_W[s]/B
    N = wsb_ref.shape[0]
    B, Pl = mask_ref.shape
    Ph = r_ref.shape[1]
    S = N // B

    def rsum(x):                                   # lane reduce -> (rows, 1)
        return jnp.sum(x, axis=-1, keepdims=True)

    def rmax(x):
        return jnp.max(x, axis=-1, keepdims=True)

    # ---- heads: one lane-dense matmul per network --------------------------
    p = (jnp.dot(wsb_ref[...], xs_ref[...], preferred_element_type=jnp.float32)
         + bsb_ref[...])                                              # (N, Pl)
    t = (jnp.dot(wtb_ref[...], xt_ref[...], preferred_element_type=jnp.float32)
         + btb_ref[...])                                              # (N, Ph)
    # (teacher runs under torch.no_grad() in the reference; forward values identical)

    # labels broadcast across the (padded) stage axis: row n = b*S + s
    m = jnp.concatenate(
        [jnp.broadcast_to(mask_ref[b:b + 1, :], (S, Pl)) for b in range(B)], axis=0)

    # ---- SOD structure loss: BCE-with-logits mean + soft IoU ---------------
    e = jnp.exp(-jnp.abs(p))                       # shared: softplus + sigmoid
    r_e = pl.reciprocal(1.0 + e, approx=True)
    sig = jnp.where(p >= 0.0, r_e, e * r_e)        # sigmoid(p)
    bce_row = rsum(jnp.maximum(p, 0.0) - p * m + jnp.log(1.0 + e))    # (N, 1)
    inter = rsum(sig * m)
    union = rsum(sig) + rsum(m)
    wiou = 1.0 - (inter + 1.0) * pl.reciprocal(union - inter + 1.0, approx=True)
    sod_row = bce_row * (1.0 / Pl) + wiou                             # (N, 1)
    o_sod_ref[0, 0] = jnp.sum(w_ref[:, 0:1] * sod_row)

    # ---- distillation: fused bilinear upsample + logit-standardized KL -----
    up = jnp.dot(p, r_ref[...], preferred_element_type=jnp.float32)   # (N, Ph)

    inv_n = 1.0 / Ph
    inv_nm1 = 1.0 / (Ph - 1)

    def standardize(v):
        # (v - mean) / (eps + unbiased std) / Temp, per row; single-pass stats.
        # NOTE: eps is added to std (not var) to match the reference numerics.
        s1 = rsum(v)
        s2 = rsum(v * v)
        mu = s1 * inv_n
        var = jnp.maximum((s2 - s1 * mu) * inv_nm1, 0.0)
        scale = pl.reciprocal(EPS + jnp.sqrt(var), approx=True) * (1.0 / TEMP)
        return (v - mu) * scale

    ls = standardize(up)
    lt = standardize(t)

    ls_s = ls - rmax(ls)                           # student log-softmax (per row)
    logp = ls_s - jnp.log(rsum(jnp.exp(ls_s)))
    lt_s = lt - rmax(lt)                           # teacher softmax, exp reused
    et = jnp.exp(lt_s)
    z_t = rsum(et)
    q = et * pl.reciprocal(z_t, approx=True)
    logq = lt_s - jnp.log(z_t)

    # KLDivLoss(reduction='batchmean'): sum over pixels, 1/B folded into w_ref.
    # NOTE: the PyTorch reference applies no Temp**2 factor, so neither do we.
    row_kl = rsum(q * (logq - logp))               # (N, 1)
    o_kd_ref[0, 0] = jnp.sum(w_ref[:, 1:2] * row_kl)


def fused_forward_train(x_lr, x_hr, labels_lr, w_s, b_s, w_t, b_t):
    B, C, Hl, Wl = x_lr.shape
    _, _, Hh, Wh = x_hr.shape
    S = w_s.shape[0]                 # padded stage count (8)
    N = B * S
    Pl, Ph = Hl * Wl, Hh * Wh

    xs = x_lr.reshape(B * C, Pl)     # free reshapes of NCHW inputs
    xt = x_hr.reshape(B * C, Ph)
    eye_b = jnp.eye(B, dtype=jnp.float32)
    wsb = jnp.kron(eye_b, w_s)       # (N, B*C) block-diagonal head weights
    wtb = jnp.kron(eye_b, w_t)
    bsb = jnp.tile(b_s, (B, 1))      # (N, 1)
    btb = jnp.tile(b_t, (B, 1))
    mask = labels_lr.reshape(B, Pl).astype(jnp.float32)

    # Bilinear align_corners=True upsample (Hl,Wl)->(Hh,Wh) as a single matrix.
    r_up = jnp.kron(_interp_matrix(Hh, Hl).T, _interp_matrix(Wh, Wl).T)  # (Pl, Ph)

    # Per-row loss weights (padded stages get weight 0); 1/B batch-mean folded in.
    sod_w = jnp.concatenate([jnp.array(SOD_W, jnp.float32),
                             jnp.zeros((S - len(SOD_W),), jnp.float32)])
    kd_w = jnp.concatenate([jnp.array(KD_W, jnp.float32),
                            jnp.zeros((S - len(KD_W),), jnp.float32)])
    w_rows = jnp.stack([jnp.tile(sod_w, B), jnp.tile(kd_w, B)], axis=1) / B  # (N, 2)

    loss_sod, loss_kd = pl.pallas_call(
        _fused_train_kernel,
        out_shape=(jax.ShapeDtypeStruct((1, 1), jnp.float32),
                   jax.ShapeDtypeStruct((1, 1), jnp.float32)),
        in_specs=[pl.BlockSpec(memory_space=VMEM)] * 9,
        out_specs=(pl.BlockSpec(memory_space=SMEM),
                   pl.BlockSpec(memory_space=SMEM)),
    )(xs, xt, wsb, bsb, wtb, btb, mask, r_up, w_rows)
    return loss_sod[0, 0], loss_kd[0, 0]


# ---------------------------------------------------------------------------
# Eval path: only student_smap1 is needed (stage-0 head), one tiny kernel.
# ---------------------------------------------------------------------------
def _eval_head_kernel(x_ref, w_ref, b_ref, o_ref):
    o_ref[...] = (jnp.dot(w_ref[...], x_ref[...],
                          preferred_element_type=jnp.float32) + b_ref[...])


def eval_forward(x_lr, w_s, b_s):
    B, C, Hl, Wl = x_lr.shape
    Pl = Hl * Wl
    xs = x_lr.reshape(B * C, Pl)
    w0 = jnp.kron(jnp.eye(B, dtype=jnp.float32), w_s[0:1, :])   # (B, B*C)
    b0 = jnp.tile(b_s[0:1, :], (B, 1))                          # (B, 1)
    smap = pl.pallas_call(
        _eval_head_kernel,
        out_shape=jax.ShapeDtypeStruct((B, Pl), jnp.float32),
        in_specs=[pl.BlockSpec(memory_space=VMEM)] * 3,
        out_specs=pl.BlockSpec(memory_space=VMEM),
    )(xs, w0, b0)
    return smap.reshape(B, 1, Hl, Wl)


# ---------------------------------------------------------------------------
# Module wrapper (mirrors PSPNet_LogitStdKD.forward / distillation_loss).
# ---------------------------------------------------------------------------
class PSPNetLogitStdKD:
    def __init__(self, key, in_ch=4, n_stages=5, stage_pad=8):
        ks, kt = jax.random.split(key)
        w_s = jax.random.normal(ks, (n_stages, in_ch), jnp.float32) * 0.5
        w_t = jax.random.normal(kt, (n_stages, in_ch), jnp.float32) * 0.5
        b_s = jnp.linspace(-0.1, 0.1, n_stages, dtype=jnp.float32).reshape(n_stages, 1)
        b_t = jnp.linspace(0.1, -0.1, n_stages, dtype=jnp.float32).reshape(n_stages, 1)
        pad = stage_pad - n_stages
        # Stage axis padded 5 -> 8 with zero rows (zero loss weight) so the
        # stacked row axis N = B*S is a full sublane tile (no masked partial stores).
        self.w_s = jnp.pad(w_s, ((0, pad), (0, 0)))
        self.w_t = jnp.pad(w_t, ((0, pad), (0, 0)))
        self.b_s = jnp.pad(b_s, ((0, pad), (0, 0)))
        self.b_t = jnp.pad(b_t, ((0, pad), (0, 0)))
        self._train_fn = jax.jit(self._forward_train)
        self._eval_fn = jax.jit(self._forward_eval)

    def _forward_train(self, x_lr, x_hr, labels_lr):
        return fused_forward_train(x_lr, x_hr, labels_lr,
                                   self.w_s, self.b_s, self.w_t, self.b_t)

    def _forward_eval(self, x_lr):
        return eval_forward(x_lr, self.w_s, self.b_s)

    def __call__(self, x_lr, x_hr=None, labels_lr=None, training=True):
        if training:
            return self._train_fn(x_lr, x_hr, labels_lr)
        return self._eval_fn(x_lr)


if __name__ == "__main__":
    key = jax.random.PRNGKey(0)
    k1, k2, k3, kp = jax.random.split(key, 4)
    B, Cin = 2, 4
    Hl = Wl = 16   # low-res student input
    Hh = Wh = 32   # high-res teacher input
    x_lr = jax.random.normal(k1, (B, Cin, Hl, Wl), jnp.float32)
    x_hr = jax.random.normal(k2, (B, Cin, Hh, Wh), jnp.float32)
    labels_lr = (jax.random.uniform(k3, (B, 1, Hl, Wl)) > 0.5).astype(jnp.float32)

    model = PSPNetLogitStdKD(kp, in_ch=Cin)

    # training path: (loss_sod, loss_distillation)
    loss_sod, loss_distillation = model(x_lr, x_hr, labels_lr, training=True)
    jax.block_until_ready((loss_sod, loss_distillation))

    # eval path: student_smap1
    smap1 = model(x_lr, training=False)
    jax.block_until_ready(smap1)

    print("KERNEL_OK")
</pallas_src>

<mosaic_0001>
module attributes {stable_mosaic.version = 11 : i64} {
  func.func @_fused_train_kernel(%arg0: memref<8x256xf32, #tpu.memory_space<vmem>>, %arg1: memref<8x1024xf32, #tpu.memory_space<vmem>>, %arg2: memref<16x8xf32, #tpu.memory_space<vmem>>, %arg3: memref<16x1xf32, #tpu.memory_space<vmem>>, %arg4: memref<16x8xf32, #tpu.memory_space<vmem>>, %arg5: memref<16x1xf32, #tpu.memory_space<vmem>>, %arg6: memref<2x256xf32, #tpu.memory_space<vmem>>, %arg7: memref<256x1024xf32, #tpu.memory_space<vmem>>, %arg8: memref<16x2xf32, #tpu.memory_space<vmem>>, %arg9: memref<1x1xf32, #tpu.memory_space<smem>>, %arg10: memref<1x1xf32, #tpu.memory_space<smem>>) attributes {dimension_semantics = [], scalar_prefetch = 0 : i64, scratch_operands = 0 : i64, tpu.core_type = #tpu.core_type<tc>} {
    %c0 = arith.constant 0 : index
    %c0_0 = arith.constant 0 : index
    %0 = vector.load %arg2[%c0, %c0_0] : memref<16x8xf32, #tpu.memory_space<vmem>>, vector<16x8xf32>
    %c0_1 = arith.constant 0 : index
    %c0_2 = arith.constant 0 : index
    %1 = vector.load %arg0[%c0_1, %c0_2] : memref<8x256xf32, #tpu.memory_space<vmem>>, vector<8x256xf32>
    %cst = arith.constant dense<0.000000e+00> : vector<16x256xf32>
    %2 = tpu.matmul %0, %1, %cst {dimension_numbers = #tpu.dot_dimension_numbers<[1], [0], [0], [1], [0, 0, 1, 1], [], []>} : vector<16x8xf32>, vector<8x256xf32>, vector<16x256xf32> -> vector<16x256xf32>
    %c0_3 = arith.constant 0 : index
    %c0_4 = arith.constant 0 : index
    %3 = vector.load %arg3[%c0_3, %c0_4] : memref<16x1xf32, #tpu.memory_space<vmem>>, vector<16x1xf32>
    %4 = vector.broadcast %3 : vector<16x1xf32> to vector<16x256xf32>
    %5 = arith.addf %2, %4 : vector<16x256xf32>
    %c0_5 = arith.constant 0 : index
    %c0_6 = arith.constant 0 : index
    %6 = vector.load %arg4[%c0_5, %c0_6] : memref<16x8xf32, #tpu.memory_space<vmem>>, vector<16x8xf32>
    %c0_7 = arith.constant 0 : index
    %c0_8 = arith.constant 0 : index
    %7 = vector.load %arg1[%c0_7, %c0_8] : memref<8x1024xf32, #tpu.memory_space<vmem>>, vector<8x1024xf32>
    %cst_9 = arith.constant dense<0.000000e+00> : vector<16x1024xf32>
    %8 = tpu.matmul %6, %7, %cst_9 {dimension_numbers = #tpu.dot_dimension_numbers<[1], [0], [0], [1], [0, 0, 1, 1], [], []>} : vector<16x8xf32>, vector<8x1024xf32>, vector<16x1024xf32> -> vector<16x1024xf32>
    %c0_10 = arith.constant 0 : index
    %c0_11 = arith.constant 0 : index
    %9 = vector.load %arg5[%c0_10, %c0_11] : memref<16x1xf32, #tpu.memory_space<vmem>>, vector<16x1xf32>
    %10 = vector.broadcast %9 : vector<16x1xf32> to vector<16x1024xf32>
    %11 = arith.addf %8, %10 : vector<16x1024xf32>
    %c0_12 = arith.constant 0 : index
    %c0_13 = arith.constant 0 : index
    %12 = vector.load %arg6[%c0_12, %c0_13] : memref<2x256xf32, #tpu.memory_space<vmem>>, vector<1x256xf32>
    %13 = vector.shape_cast %12 : vector<1x256xf32> to vector<1x256xf32>
    %14 = vector.broadcast %13 : vector<1x256xf32> to vector<8x256xf32>
    %c1 = arith.constant 1 : index
    %c0_14 = arith.constant 0 : index
    %15 = vector.load %arg6[%c1, %c0_14] : memref<2x256xf32, #tpu.memory_space<vmem>>, vector<1x256xf32>
    %16 = vector.shape_cast %15 : vector<1x256xf32> to vector<1x256xf32>
    %17 = vector.broadcast %16 : vector<1x256xf32> to vector<8x256xf32>
    %18 = tpu.concatenate %14, %17 in 0 : vector<8x256xf32>, vector<8x256xf32> -> vector<16x256xf32>
    %19 = math.absf %5 : vector<16x256xf32>
    %cst_15 = arith.constant 0.000000e+00 : f32
    %20 = vector.broadcast %cst_15 : f32 to vector<16x256xf32>
    %21 = arith.subf %20, %19 : vector<16x256xf32>
    %22 = math.exp %21 : vector<16x256xf32>
    %cst_16 = arith.constant 1.000000e+00 : f32
    %23 = vector.broadcast %cst_16 : f32 to vector<16x256xf32>
    %24 = arith.addf %23, %22 : vector<16x256xf32>
    %25 = tpu.reciprocal %24 {approx = true} : vector<16x256xf32> -> vector<16x256xf32>
    %cst_17 = arith.constant 0.000000e+00 : f32
    %26 = vector.broadcast %cst_17 : f32 to vector<16x256xf32>
    %27 = arith.cmpf oge, %5, %26 : vector<16x256xf32>
    %28 = arith.mulf %22, %25 : vector<16x256xf32>
    %29 = arith.select %27, %25, %28 : vector<16x256xi1>, vector<16x256xf32>
    %cst_18 = arith.constant 0.000000e+00 : f32
    %30 = vector.broadcast %cst_18 : f32 to vector<16x256xf32>
    %31 = arith.maximumf %5, %30 : vector<16x256xf32>
    %32 = arith.mulf %5, %18 : vector<16x256xf32>
    %33 = arith.subf %31, %32 : vector<16x256xf32>
    %cst_19 = arith.constant 1.000000e+00 : f32
    %34 = vector.broadcast %cst_19 : f32 to vector<16x256xf32>
    %35 = arith.addf %34, %22 : vector<16x256xf32>
    %36 = math.log %35 : vector<16x256xf32>
    %37 = arith.addf %33, %36 : vector<16x256xf32>
    %cst_20 = arith.constant dense<0.000000e+00> : vector<16xf32>
    %38 = vector.multi_reduction <add>, %37, %cst_20 [1] : vector<16x256xf32> to vector<16xf32>
    %39 = vector.shape_cast %38 : vector<16xf32> to vector<16x1xf32>
    %40 = arith.mulf %29, %18 : vector<16x256xf32>
    %cst_21 = arith.constant dense<0.000000e+00> : vector<16xf32>
    %41 = vector.multi_reduction <add>, %40, %cst_21 [1] : vector<16x256xf32> to vector<16xf32>
    %42 = vector.shape_cast %41 : vector<16xf32> to vector<16x1xf32>
    %cst_22 = arith.constant dense<0.000000e+00> : vector<16xf32>
    %43 = vector.multi_reduction <add>, %29, %cst_22 [1] : vector<16x256xf32> to vector<16xf32>
    %44 = vector.shape_cast %43 : vector<16xf32> to vector<16x1xf32>
    %cst_23 = arith.constant dense<0.000000e+00> : vector<16xf32>
    %45 = vector.multi_reduction <add>, %18, %cst_23 [1] : vector<16x256xf32> to vector<16xf32>
    %46 = vector.shape_cast %45 : vector<16xf32> to vector<16x1xf32>
    %47 = arith.addf %44, %46 : vector<16x1xf32>
    %cst_24 = arith.constant 1.000000e+00 : f32
    %48 = vector.broadcast %cst_24 : f32 to vector<16x1xf32>
    %49 = arith.addf %42, %48 : vector<16x1xf32>
    %50 = arith.subf %47, %42 : vector<16x1xf32>
    %cst_25 = arith.constant 1.000000e+00 : f32
    %51 = vector.broadcast %cst_25 : f32 to vector<16x1xf32>
    %52 = arith.addf %50, %51 : vector<16x1xf32>
    %53 = tpu.reciprocal %52 {approx = true} : vector<16x1xf32> -> vector<16x1xf32>
    %54 = arith.mulf %49, %53 : vector<16x1xf32>
    %cst_26 = arith.constant 1.000000e+00 : f32
    %55 = vector.broadcast %cst_26 : f32 to vector<16x1xf32>
    %56 = arith.subf %55, %54 : vector<16x1xf32>
    %cst_27 = arith.constant 3.906250e-03 : f32
    %57 = vector.broadcast %cst_27 : f32 to vector<16x1xf32>
    %58 = arith.mulf %39, %57 : vector<16x1xf32>
    %59 = arith.addf %58, %56 : vector<16x1xf32>
    %c0_28 = arith.constant 0 : index
    %c0_29 = arith.constant 0 : index
    %60 = vector.load %arg8[%c0_28, %c0_29] : memref<16x2xf32, #tpu.memory_space<vmem>>, vector<16x1xf32>
    %61 = arith.mulf %60, %59 : vector<16x1xf32>
    %62 = vector.shape_cast %61 : vector<16x1xf32> to vector<1x16x1xf32>
    %cst_30 = arith.constant dense<0.000000e+00> : vector<1xf32>
    %63 = vector.multi_reduction <add>, %62, %cst_30 [1, 2] : vector<1x16x1xf32> to vector<1xf32>
    %64 = vector.shape_cast %63 : vector<1xf32> to vector<1x1x1xf32>
    %65 = vector.extract %64[0, 0, 0] : f32 from vector<1x1x1xf32>
    %c0_31 = arith.constant 0 : index
    %c0_32 = arith.constant 0 : index
    %66 = memref.load %arg9[%c0_31, %c0_32] : memref<1x1xf32, #tpu.memory_space<smem>>
    memref.store %65, %arg9[%c0_31, %c0_32] : memref<1x1xf32, #tpu.memory_space<smem>>
    %c0_33 = arith.constant 0 : index
    %c0_34 = arith.constant 0 : index
    %67 = vector.load %arg7[%c0_33, %c0_34] : memref<256x1024xf32, #tpu.memory_space<vmem>>, vector<256x1024xf32>
    %cst_35 = arith.constant dense<0.000000e+00> : vector<16x1024xf32>
    %68 = tpu.matmul %5, %67, %cst_35 {dimension_numbers = #tpu.dot_dimension_numbers<[1], [0], [0], [1], [0, 0, 1, 1], [], []>} : vector<16x256xf32>, vector<256x1024xf32>, vector<16x1024xf32> -> vector<16x1024xf32>
    %cst_36 = arith.constant dense<0.000000e+00> : vector<16xf32>
    %69 = vector.multi_reduction <add>, %68, %cst_36 [1] : vector<16x1024xf32> to vector<16xf32>
    %70 = vector.shape_cast %69 : vector<16xf32> to vector<16x1xf32>
    %71 = arith.mulf %68, %68 : vector<16x1024xf32>
    %cst_37 = arith.constant dense<0.000000e+00> : vector<16xf32>
    %72 = vector.multi_reduction <add>, %71, %cst_37 [1] : vector<16x1024xf32> to vector<16xf32>
    %73 = vector.shape_cast %72 : vector<16xf32> to vector<16x1xf32>
    %cst_38 = arith.constant 9.765625E-4 : f32
    %74 = vector.broadcast %cst_38 : f32 to vector<16x1xf32>
    %75 = arith.mulf %70, %74 : vector<16x1xf32>
    %76 = arith.mulf %70, %75 : vector<16x1xf32>
    %77 = arith.subf %73, %76 : vector<16x1xf32>
    %cst_39 = arith.constant 9.77517105E-4 : f32
    %78 = vector.broadcast %cst_39 : f32 to vector<16x1xf32>
    %79 = arith.mulf %77, %78 : vector<16x1xf32>
    %cst_40 = arith.constant 0.000000e+00 : f32
    %80 = vector.broadcast %cst_40 : f32 to vector<16x1xf32>
    %81 = arith.maximumf %79, %80 : vector<16x1xf32>
    %82 = math.sqrt %81 : vector<16x1xf32>
    %cst_41 = arith.constant 1.000000e-07 : f32
    %83 = vector.broadcast %cst_41 : f32 to vector<16x1xf32>
    %84 = arith.addf %83, %82 : vector<16x1xf32>
    %85 = tpu.reciprocal %84 {approx = true} : vector<16x1xf32> -> vector<16x1xf32>
    %cst_42 = arith.constant 2.500000e-01 : f32
    %86 = vector.broadcast %cst_42 : f32 to vector<16x1xf32>
    %87 = arith.mulf %85, %86 : vector<16x1xf32>
    %88 = vector.broadcast %75 : vector<16x1xf32> to vector<16x1024xf32>
    %89 = arith.subf %68, %88 : vector<16x1024xf32>
    %90 = vector.broadcast %87 : vector<16x1xf32> to vector<16x1024xf32>
    %91 = arith.mulf %89, %90 : vector<16x1024xf32>
    %cst_43 = arith.constant dense<0.000000e+00> : vector<16xf32>
    %92 = vector.multi_reduction <add>, %11, %cst_43 [1] : vector<16x1024xf32> to vector<16xf32>
    %93 = vector.shape_cast %92 : vector<16xf32> to vector<16x1xf32>
    %94 = arith.mulf %11, %11 : vector<16x1024xf32>
    %cst_44 = arith.constant dense<0.000000e+00> : vector<16xf32>
    %95 = vector.multi_reduction <add>, %94, %cst_44 [1] : vector<16x1024xf32> to vector<16xf32>
    %96 = vector.shape_cast %95 : vector<16xf32> to vector<16x1xf32>
    %cst_45 = arith.constant 9.765625E-4 : f32
    %97 = vector.broadcast %cst_45 : f32 to vector<16x1xf32>
    %98 = arith.mulf %93, %97 : vector<16x1xf32>
    %99 = arith.mulf %93, %98 : vector<16x1xf32>
    %100 = arith.subf %96, %99 : vector<16x1xf32>
    %cst_46 = arith.constant 9.77517105E-4 : f32
    %101 = vector.broadcast %cst_46 : f32 to vector<16x1xf32>
    %102 = arith.mulf %100, %101 : vector<16x1xf32>
    %cst_47 = arith.constant 0.000000e+00 : f32
    %103 = vector.broadcast %cst_47 : f32 to vector<16x1xf32>
    %104 = arith.maximumf %102, %103 : vector<16x1xf32>
    %105 = math.sqrt %104 : vector<16x1xf32>
    %cst_48 = arith.constant 1.000000e-07 : f32
    %106 = vector.broadcast %cst_48 : f32 to vector<16x1xf32>
    %107 = arith.addf %106, %105 : vector<16x1xf32>
    %108 = tpu.reciprocal %107 {approx = true} : vector<16x1xf32> -> vector<16x1xf32>
    %cst_49 = arith.constant 2.500000e-01 : f32
    %109 = vector.broadcast %cst_49 : f32 to vector<16x1xf32>
    %110 = arith.mulf %108, %109 : vector<16x1xf32>
    %111 = vector.broadcast %98 : vector<16x1xf32> to vector<16x1024xf32>
    %112 = arith.subf %11, %111 : vector<16x1024xf32>
    %113 = vector.broadcast %110 : vector<16x1xf32> to vector<16x1024xf32>
    %114 = arith.mulf %112, %113 : vector<16x1024xf32>
    %cst_50 = arith.constant dense<0xFF800000> : vector<16xf32>
    %115 = vector.multi_reduction <maximumf>, %91, %cst_50 [1] : vector<16x1024xf32> to vector<16xf32>
    %116 = vector.shape_cast %115 : vector<16xf32> to vector<16x1xf32>
    %117 = vector.broadcast %116 : vector<16x1xf32> to vector<16x1024xf32>
    %118 = arith.subf %91, %117 : vector<16x1024xf32>
    %119 = math.exp %118 : vector<16x1024xf32>
    %cst_51 = arith.constant dense<0.000000e+00> : vector<16xf32>
    %120 = vector.multi_reduction <add>, %119, %cst_51 [1] : vector<16x1024xf32> to vector<16xf32>
    %121 = vector.shape_cast %120 : vector<16xf32> to vector<16x1xf32>
    %122 = math.log %121 : vector<16x1xf32>
    %123 = vector.broadcast %122 : vector<16x1xf32> to vector<16x1024xf32>
    %124 = arith.subf %118, %123 : vector<16x1024xf32>
    %cst_52 = arith.constant dense<0xFF800000> : vector<16xf32>
    %125 = vector.multi_reduction <maximumf>, %114, %cst_52 [1] : vector<16x1024xf32> to vector<16xf32>
    %126 = vector.shape_cast %125 : vector<16xf32> to vector<16x1xf32>
    %127 = vector.broadcast %126 : vector<16x1xf32> to vector<16x1024xf32>
    %128 = arith.subf %114, %127 : vector<16x1024xf32>
    %129 = math.exp %128 : vector<16x1024xf32>
    %cst_53 = arith.constant dense<0.000000e+00> : vector<16xf32>
    %130 = vector.multi_reduction <add>, %129, %cst_53 [1] : vector<16x1024xf32> to vector<16xf32>
    %131 = vector.shape_cast %130 : vector<16xf32> to vector<16x1xf32>
    %132 = tpu.reciprocal %131 {approx = true} : vector<16x1xf32> -> vector<16x1xf32>
    %133 = vector.broadcast %132 : vector<16x1xf32> to vector<16x1024xf32>
    %134 = arith.mulf %129, %133 : vector<16x1024xf32>
    %135 = math.log %131 : vector<16x1xf32>
    %136 = vector.broadcast %135 : vector<16x1xf32> to vector<16x1024xf32>
    %137 = arith.subf %128, %136 : vector<16x1024xf32>
    %138 = arith.subf %137, %124 : vector<16x1024xf32>
    %139 = arith.mulf %134, %138 : vector<16x1024xf32>
    %cst_54 = arith.constant dense<0.000000e+00> : vector<16xf32>
    %140 = vector.multi_reduction <add>, %139, %cst_54 [1] : vector<16x1024xf32> to vector<16xf32>
    %141 = vector.shape_cast %140 : vector<16xf32> to vector<16x1xf32>
    %c0_55 = arith.constant 0 : index
    %c1_56 = arith.constant 1 : index
    %142 = vector.load %arg8[%c0_55, %c1_56] : memref<16x2xf32, #tpu.memory_space<vmem>>, vector<16x1xf32>
    %143 = arith.mulf %142, %141 : vector<16x1xf32>
    %144 = vector.shape_cast %143 : vector<16x1xf32> to vector<1x16x1xf32>
    %cst_57 = arith.constant dense<0.000000e+00> : vector<1xf32>
    %145 = vector.multi_reduction <add>, %144, %cst_57 [1, 2] : vector<1x16x1xf32> to vector<1xf32>
    %146 = vector.shape_cast %145 : vector<1xf32> to vector<1x1x1xf32>
    %147 = vector.extract %146[0, 0, 0] : f32 from vector<1x1x1xf32>
    %c0_58 = arith.constant 0 : index
    %c0_59 = arith.constant 0 : index
    %148 = memref.load %arg10[%c0_58, %c0_59] : memref<1x1xf32, #tpu.memory_space<smem>>
    memref.store %147, %arg10[%c0_58, %c0_59] : memref<1x1xf32, #tpu.memory_space<smem>>
    return
  }
}

</mosaic_0001>

<llo_original>
// kernel: tile.26
$region0: #{tile.26}
  #allocation0 [shape = 's32[1]{0}', space=sflag, size = 0x4, scoped, tag = 'scoped memory for tile.26']
  %s0 = inlined_call_operand.vmem [shape: f32[8], index: 0, kind: input, shape index: {}]
  %s1 = inlined_call_operand.vmem [shape: f32[2,8], index: 1, kind: output, shape index: {}]
  // Predicated region
  $region2: #{tile.26} parent=0 // pred_check
    _
  $region3: #{tile.26} parent=0 // pred_check_branch
    %3 = sbr.rel (0) target = $region5
  $region4: #{tile.26} parent=0 // pred_region
    _
  $region5: #{tile.26} parent=0 // pred_fallthru
    _
  %v4 = vld [vmem:[%s0] ss:$0 sm:$0xff]
  %5 = vst [vmem:[%s1] sm:$0x3] %v4

// kernel: tile.30
$region0: #{tile.30}
  %s0 = inlined_call_operand.vmem [shape: f32[2,8], index: 0, kind: input, shape index: {}]
  %s1 = inlined_call_operand.vmem [shape: f32[16,1], index: 1, kind: output, shape index: {}]
  $region1: #{tile.30} parent=0
    #allocation0 [shape = 'u8[4096]{0}', space=vmem, size = 0x1000, scoped, tag = 'scoped mem for output reshape']
    #allocation1 [shape = 'u8[4096]{0}', space=vmem, size = 0x1000, scoped, tag = 'scoped mem for input reshape']
    %s3 = ssub.s32 4, 1
    %v4 = vld [vmem:[%s0] sm:%s3]
    %5 = vst [vmem:[#allocation1] sm:%s3] %v4
    %v6 = vld [vmem:[#allocation1] sm:$0x1]
    %vm7 = vcmask 64512
    %8 = vst.msk [vmem:[#allocation0] sm:$0x1] %vm7, %v6
    %s9 = scalar_lea.vmem [#allocation1], 1
    %v10 = vld [vmem:[%s9] sm:$0x1]
    %11 = vrot.lane.b32.xlu0 %v10, 8
    %v12 = vpop.permute.xlu0 %11
    %vm13 = vcmask 130112
    %14 = vst.msk [vmem:[#allocation0] sm:$0x1] %vm13, %v12
    %s16 = ssub.s32 2, 1
    %v17 = vld [vmem:[#allocation0] sm:%s16]
    %s19 = ssub.s32 2, 1
    %20 = vst [vmem:[%s1] sm:%s19] %v17

// kernel: _forward_train.1
$region0: #{_forward_train.1}
  #allocation0 [shape = 'u32[]', space=smem, size = 0x4, offset = 0x4, fixed_abs, tag = 'smem constant byte address 0x4 - core index']
  #allocation1 [shape = 'u32[72,128]{1,0:T(1,128)}', space=vmem, size = 0x9000, scoped, tag = 'internal scratch']
  %s0 = inlined_call_operand.vmem [shape: f32[8,256], index: 0, kind: input, shape index: {}]
  %s1 = inlined_call_operand.vmem [shape: f32[8,1024], index: 1, kind: input, shape index: {}]
  %s2 = inlined_call_operand.vmem [shape: f32[16,8], index: 2, kind: input, shape index: {}]
  %s3 = inlined_call_operand.vmem [shape: f32[16,1], index: 3, kind: input, shape index: {}]
  %s4 = inlined_call_operand.vmem [shape: f32[16,8], index: 4, kind: input, shape index: {}]
  %s5 = inlined_call_operand.vmem [shape: f32[16,1], index: 5, kind: input, shape index: {}]
  %s6 = inlined_call_operand.vmem [shape: f32[2,256], index: 6, kind: input, shape index: {}]
  %s7 = inlined_call_operand.vmem [shape: f32[256,1024], index: 7, kind: input, shape index: {}]
  %s8 = inlined_call_operand.vmem [shape: f32[16,2], index: 8, kind: input, shape index: {}]
  %s9 = inlined_call_operand.hbm [shape: f32[1,1], index: 9, kind: output, shape index: {0}]
  %s10 = inlined_call_operand.hbm [shape: f32[1,1], index: 10, kind: output, shape index: {1}]
  %11 = xla_tuple %s9, %s10
  %s12 = sld [smem:[#allocation0]]
  $region54: #{_forward_train.1} parent=0
    _
  %s14 = ssub.s32 1, %s12
  %s15 = scalar_select 0, %s14, %s12
  $region1: #{_forward_train.1} parent=0
    #allocation2 [shape = 'u8[512]{0}', space=smem, size = 0x200, scoped, tag = 'output window, operand 0, single buffered']
    #allocation3 [shape = 's32[1]{0}', space=sflag, size = 0x4, scoped, tag = 'scoped memory for _forward_train.1']
    #allocation4 [shape = 'u8[512]{0}', space=smem, size = 0x200, scoped, tag = 'output window, operand 1, single buffered']
    #allocation5 [shape = 's32[1]{0}', space=sflag, size = 0x4, scoped, tag = 'scoped memory for _forward_train.1']
    %16 = vsyncpa [#allocation3], 0
    %17 = vsyncpa [#allocation5], 0
    // Predicated region
    $region2: #{_forward_train.1} parent=1 // pred_check
      _
    $region3: #{_forward_train.1} parent=1 // pred_check_branch
      %19 = sbr.rel (0) target = $region5
    $region4: #{_forward_train.1} parent=1 // pred_region
      _
    $region5: #{_forward_train.1} parent=1 // pred_fallthru
      _
    // Predicated region
    $region6: #{_forward_train.1} parent=1 // pred_check
      _
    $region7: #{_forward_train.1} parent=1 // pred_check_branch
      %21 = sbr.rel (0) target = $region9
    $region8: #{_forward_train.1} parent=1 // pred_region
      _
    $region9: #{_forward_train.1} parent=1 // pred_fallthru
      _
    // Predicated region
    $region10: #{_forward_train.1} parent=1 // pred_check
      _
    $region11: #{_forward_train.1} parent=1 // pred_check_branch
      %23 = sbr.rel (0) target = $region13
    $region12: #{_forward_train.1} parent=1 // pred_region
      _
    $region13: #{_forward_train.1} parent=1 // pred_fallthru
      _
    // Predicated region
    $region14: #{_forward_train.1} parent=1 // pred_check
      _
    $region15: #{_forward_train.1} parent=1 // pred_check_branch
      %25 = sbr.rel (0) target = $region17
    $region16: #{_forward_train.1} parent=1 // pred_region
      _
    $region17: #{_forward_train.1} parent=1 // pred_fallthru
      _
    // Predicated region
    $region18: #{_forward_train.1} parent=1 // pred_check
      _
    $region19: #{_forward_train.1} parent=1 // pred_check_branch
      %27 = sbr.rel (0) target = $region21
    $region20: #{_forward_train.1} parent=1 // pred_region
      _
    $region21: #{_forward_train.1} parent=1 // pred_fallthru
      _
    // Predicated region
    $region22: #{_forward_train.1} parent=1 // pred_check
      _
    $region23: #{_forward_train.1} parent=1 // pred_check_branch
      %29 = sbr.rel (0) target = $region25
    $region24: #{_forward_train.1} parent=1 // pred_region
      _
    $region25: #{_forward_train.1} parent=1 // pred_fallthru
      _
    // Predicated region
    $region26: #{_forward_train.1} parent=1 // pred_check
      _
    $region27: #{_forward_train.1} parent=1 // pred_check_branch
      %31 = sbr.rel (0) target = $region29
    $region28: #{_forward_train.1} parent=1 // pred_region
      _
    $region29: #{_forward_train.1} parent=1 // pred_fallthru
      _
    // Predicated region
    $region30: #{_forward_train.1} parent=1 // pred_check
      _
    $region31: #{_forward_train.1} parent=1 // pred_check_branch
      %33 = sbr.rel (0) target = $region33
    $region32: #{_forward_train.1} parent=1 // pred_region
      _
    $region33: #{_forward_train.1} parent=1 // pred_fallthru
      _
    // Predicated region
    $region34: #{_forward_train.1} parent=1 // pred_check
      _
    $region35: #{_forward_train.1} parent=1 // pred_check_branch
      %35 = sbr.rel (0) target = $region37
    $region36: #{_forward_train.1} parent=1 // pred_region
      _
    $region37: #{_forward_train.1} parent=1 // pred_fallthru
      _
    %v36 = vld [vmem:[%s2] sm:$0xff]
    %v37 = vld [vmem:[%s2 + $0x8] sm:$0xff]
    %v38 = vld [vmem:[%s0] sm:$0xff]
    %v39 = vld [vmem:[%s0 + $0x8] sm:$0xff]
    %v40 = vld [vmem:[%s3] sm:$0xff]
    %v41 = vld [vmem:[%s3 + $0x8] sm:$0xff]
    %43 = vset.pattern.permute.xlu0 0
    %44 = vperm.xlu0 %43, %v40
    %v45 = vpop.permute.xlu0 %44
    %48 = vset.pattern.permute.xlu0 0
    %49 = vperm.xlu0 %48, %v41
    %v50 = vpop.permute.xlu0 %49
    %vm52 = vcmask 64512
    %v54 = vsel %vm52, %v36, 0
    %v57 = vsel %vm52, %v37, 0
    %59 = vmatpush.msra.mxu0 0.0
    %60 = vmatpush.msra.mxu0 0.0
    %61 = vmatpush.msra.mxu0 0.0
    %62 = vmatpush.msra.mxu0 0.0
    %63 = vmatpush.msra.mxu0 0.0
    %64 = vmatpush.msra.mxu0 0.0
    %65 = vmatpush.msra.mxu0 0.0
    %66 = vmatpush.msra.mxu0 0.0
    %67 = vmatpush.msra.mxu0 0.0
    %68 = vmatpush.msra.mxu0 0.0
    %69 = vmatpush.msra.mxu0 0.0
    %70 = vmatpush.msra.mxu0 0.0
    %71 = vmatpush.msra.mxu0 0.0
    %72 = vmatpush.msra.mxu0 0.0
    %73 = vmatpush.msra.mxu0 0.0
    %74 = vmatpush.msra.mxu0 %v38
    %75 = vmatmul.f32.gmra.mxu0 %v54
    %v76 = vpop.f32.mrf.mxu0
    %v77 = vadd.f32 %v45, %v76
    %78 = vmatmul.f32.gmra.mxu0 %v57
    %v79 = vpop.f32.mrf.mxu0
    %v80 = vadd.f32 %v50, %v79
    %81 = vdwg.mxu0
    %82 = vmatpush.msra.mxu0 0.0
    %83 = vmatpush.msra.mxu0 0.0
    %84 = vmatpush.msra.mxu0 0.0
    %85 = vmatpush.msra.mxu0 0.0
    %86 = vmatpush.msra.mxu0 0.0
    %87 = vmatpush.msra.mxu0 0.0
    %88 = vmatpush.msra.mxu0 0.0
    %89 = vmatpush.msra.mxu0 0.0
    %90 = vmatpush.msra.mxu0 0.0
    %91 = vmatpush.msra.mxu0 0.0
    %92 = vmatpush.msra.mxu0 0.0
    %93 = vmatpush.msra.mxu0 0.0
    %94 = vmatpush.msra.mxu0 0.0
    %95 = vmatpush.msra.mxu0 0.0
    %96 = vmatpush.msra.mxu0 0.0
    %97 = vmatpush.msra.mxu0 %v39
    %98 = vmatmul.f32.gmra.mxu0 %v54
    %v99 = vpop.f32.mrf.mxu0
    %v100 = vadd.f32 %v45, %v99
    %101 = vmatmul.f32.gmra.mxu0 %v57
    %v102 = vpop.f32.mrf.mxu0
    %v103 = vadd.f32 %v50, %v102
    %104 = vdwg.mxu0
    %v105 = vld [vmem:[%s4] sm:$0xff]
    %v106 = vld [vmem:[%s4 + $0x8] sm:$0xff]
    %v107 = vld [vmem:[%s1] sm:$0xff]
    %v108 = vld [vmem:[%s1 + $0x8] sm:$0xff]
    %v109 = vld [vmem:[%s1 + $0x10] sm:$0xff]
    %v110 = vld [vmem:[%s1 + $0x18] sm:$0xff]
    %v111 = vld [vmem:[%s1 + $0x20] sm:$0xff]
    %v112 = vld [vmem:[%s1 + $0x28] sm:$0xff]
    %v113 = vld [vmem:[%s1 + $0x30] sm:$0xff]
    %v114 = vld [vmem:[%s1 + $0x38] sm:$0xff]
    %v115 = vld [vmem:[%s5] sm:$0xff]
    %v116 = vld [vmem:[%s5 + $0x8] sm:$0xff]
    %118 = vset.pattern.permute.xlu0 0
    %119 = vperm.xlu0 %118, %v115
    %v120 = vpop.permute.xlu0 %119
    %123 = vset.pattern.permute.xlu0 0
    %124 = vperm.xlu0 %123, %v116
    %v125 = vpop.permute.xlu0 %124
    %v128 = vsel %vm52, %v105, 0
    %v131 = vsel %vm52, %v106, 0
    %133 = vmatpush.msra.mxu0 0.0
    %134 = vmatpush.msra.mxu0 0.0
    %135 = vmatpush.msra.mxu0 0.0
    %136 = vmatpush.msra.mxu0 0.0
    %137 = vmatpush.msra.mxu0 0.0
    %138 = vmatpush.msra.mxu0 0.0
    %139 = vmatpush.msra.mxu0 0.0
    %140 = vmatpush.msra.mxu0 0.0
    %141 = vmatpush.msra.mxu0 0.0
    %142 = vmatpush.msra.mxu0 0.0
    %143 = vmatpush.msra.mxu0 0.0
    %144 = vmatpush.msra.mxu0 0.0
    %145 = vmatpush.msra.mxu0 0.0
    %146 = vmatpush.msra.mxu0 0.0
    %147 = vmatpush.msra.mxu0 0.0
    %148 = vmatpush.msra.mxu0 %v107
    %149 = vmatmul.f32.gmra.mxu0 %v128
    %v150 = vpop.f32.mrf.mxu0
    %v151 = vadd.f32 %v120, %v150
    %152 = vmatmul.f32.gmra.mxu0 %v131
    %v153 = vpop.f32.mrf.mxu0
    %v154 = vadd.f32 %v125, %v153
    %155 = vdwg.mxu0
    %156 = vmatpush.msra.mxu0 0.0
    %157 = vmatpush.msra.mxu0 0.0
    %158 = vmatpush.msra.mxu0 0.0
    %159 = vmatpush.msra.mxu0 0.0
    %160 = vmatpush.msra.mxu0 0.0
    %161 = vmatpush.msra.mxu0 0.0
    %162 = vmatpush.msra.mxu0 0.0
    %163 = vmatpush.msra.mxu0 0.0
    %164 = vmatpush.msra.mxu0 0.0
    %165 = vmatpush.msra.mxu0 0.0
    %166 = vmatpush.msra.mxu0 0.0
    %167 = vmatpush.msra.mxu0 0.0
    %168 = vmatpush.msra.mxu0 0.0
    %169 = vmatpush.msra.mxu0 0.0
    %170 = vmatpush.msra.mxu0 0.0
    %171 = vmatpush.msra.mxu0 %v108
    %172 = vmatmul.f32.gmra.mxu0 %v128
    %v173 = vpop.f32.mrf.mxu0
    %v174 = vadd.f32 %v120, %v173
    %175 = vmatmul.f32.gmra.mxu0 %v131
    %v176 = vpop.f32.mrf.mxu0
    %v177 = vadd.f32 %v125, %v176
    %178 = vdwg.mxu0
    %179 = vmatpush.msra.mxu0 0.0
    %180 = vmatpush.msra.mxu0 0.0
    %181 = vmatpush.msra.mxu0 0.0
    %182 = vmatpush.msra.mxu0 0.0
    %183 = vmatpush.msra.mxu0 0.0
    %184 = vmatpush.msra.mxu0 0.0
    %185 = vmatpush.msra.mxu0 0.0
    %186 = vmatpush.msra.mxu0 0.0
    %187 = vmatpush.msra.mxu0 0.0
    %188 = vmatpush.msra.mxu0 0.0
    %189 = vmatpush.msra.mxu0 0.0
    %190 = vmatpush.msra.mxu0 0.0
    %191 = vmatpush.msra.mxu0 0.0
    %192 = vmatpush.msra.mxu0 0.0
    %193 = vmatpush.msra.mxu0 0.0
    %194 = vmatpush.msra.mxu0 %v109
    %195 = vmatmul.f32.gmra.mxu0 %v128
    %v196 = vpop.f32.mrf.mxu0
    %v197 = vadd.f32 %v120, %v196
    %198 = vmatmul.f32.gmra.mxu0 %v131
    %v199 = vpop.f32.mrf.mxu0
    %v200 = vadd.f32 %v125, %v199
    %201 = vdwg.mxu0
    %202 = vmatpush.msra.mxu0 0.0
    %203 = vmatpush.msra.mxu0 0.0
    %204 = vmatpush.msra.mxu0 0.0
    %205 = vmatpush.msra.mxu0 0.0
    %206 = vmatpush.msra.mxu0 0.0
    %207 = vmatpush.msra.mxu0 0.0
    %208 = vmatpush.msra.mxu0 0.0
    %209 = vmatpush.msra.mxu0 0.0
    %210 = vmatpush.msra.mxu0 0.0
    %211 = vmatpush.msra.mxu0 0.0
    %212 = vmatpush.msra.mxu0 0.0
    %213 = vmatpush.msra.mxu0 0.0
    %214 = vmatpush.msra.mxu0 0.0
    %215 = vmatpush.msra.mxu0 0.0
    %216 = vmatpush.msra.mxu0 0.0
    %217 = vmatpush.msra.mxu0 %v110
    %218 = vmatmul.f32.gmra.mxu0 %v128
    %v219 = vpop.f32.mrf.mxu0
    %v220 = vadd.f32 %v120, %v219
    %221 = vmatmul.f32.gmra.mxu0 %v131
    %v222 = vpop.f32.mrf.mxu0
    %v223 = vadd.f32 %v125, %v222
    %224 = vdwg.mxu0
    %225 = vmatpush.msra.mxu0 0.0
    %226 = vmatpush.msra.mxu0 0.0
    %227 = vmatpush.msra.mxu0 0.0
    %228 = vmatpush.msra.mxu0 0.0
    %229 = vmatpush.msra.mxu0 0.0
    %230 = vmatpush.msra.mxu0 0.0
    %231 = vmatpush.msra.mxu0 0.0
    %232 = vmatpush.msra.mxu0 0.0
    %233 = vmatpush.msra.mxu0 0.0
    %234 = vmatpush.msra.mxu0 0.0
    %235 = vmatpush.msra.mxu0 0.0
    %236 = vmatpush.msra.mxu0 0.0
    %237 = vmatpush.msra.mxu0 0.0
    %238 = vmatpush.msra.mxu0 0.0
    %239 = vmatpush.msra.mxu0 0.0
    %240 = vmatpush.msra.mxu0 %v111
    %241 = vmatmul.f32.gmra.mxu0 %v128
    %v242 = vpop.f32.mrf.mxu0
    %v243 = vadd.f32 %v120, %v242
    %244 = vmatmul.f32.gmra.mxu0 %v131
    %v245 = vpop.f32.mrf.mxu0
    %v246 = vadd.f32 %v125, %v245
    %247 = vdwg.mxu0
    %248 = vmatpush.msra.mxu0 0.0
    %249 = vmatpush.msra.mxu0 0.0
    %250 = vmatpush.msra.mxu0 0.0
    %251 = vmatpush.msra.mxu0 0.0
    %252 = vmatpush.msra.mxu0 0.0
    %253 = vmatpush.msra.mxu0 0.0
    %254 = vmatpush.msra.mxu0 0.0
    %255 = vmatpush.msra.mxu0 0.0
    %256 = vmatpush.msra.mxu0 0.0
    %257 = vmatpush.msra.mxu0 0.0
    %258 = vmatpush.msra.mxu0 0.0
    %259 = vmatpush.msra.mxu0 0.0
    %260 = vmatpush.msra.mxu0 0.0
    %261 = vmatpush.msra.mxu0 0.0
    %262 = vmatpush.msra.mxu0 0.0
    %263 = vmatpush.msra.mxu0 %v112
    %264 = vmatmul.f32.gmra.mxu0 %v128
    %v265 = vpop.f32.mrf.mxu0
    %v266 = vadd.f32 %v120, %v265
    %267 = vmatmul.f32.gmra.mxu0 %v131
    %v268 = vpop.f32.mrf.mxu0
    %v269 = vadd.f32 %v125, %v268
    %270 = vdwg.mxu0
    %271 = vmatpush.msra.mxu0 0.0
    %272 = vmatpush.msra.mxu0 0.0
    %273 = vmatpush.msra.mxu0 0.0
    %274 = vmatpush.msra.mxu0 0.0
    %275 = vmatpush.msra.mxu0 0.0
    %276 = vmatpush.msra.mxu0 0.0
    %277 = vmatpush.msra.mxu0 0.0
    %278 = vmatpush.msra.mxu0 0.0
    %279 = vmatpush.msra.mxu0 0.0
    %280 = vmatpush.msra.mxu0 0.0
    %281 = vmatpush.msra.mxu0 0.0
    %282 = vmatpush.msra.mxu0 0.0
    %283 = vmatpush.msra.mxu0 0.0
    %284 = vmatpush.msra.mxu0 0.0
    %285 = vmatpush.msra.mxu0 0.0
    %286 = vmatpush.msra.mxu0 %v113
    %287 = vmatmul.f32.gmra.mxu0 %v128
    %v288 = vpop.f32.mrf.mxu0
    %v289 = vadd.f32 %v120, %v288
    %290 = vmatmul.f32.gmra.mxu0 %v131
    %v291 = vpop.f32.mrf.mxu0
    %v292 = vadd.f32 %v125, %v291
    %293 = vdwg.mxu0
    %294 = vmatpush.msra.mxu0 0.0
    %295 = vmatpush.msra.mxu0 0.0
    %296 = vmatpush.msra.mxu0 0.0
    %297 = vmatpush.msra.mxu0 0.0
    %298 = vmatpush.msra.mxu0 0.0
    %299 = vmatpush.msra.mxu0 0.0
    %300 = vmatpush.msra.mxu0 0.0
    %301 = vmatpush.msra.mxu0 0.0
    %302 = vmatpush.msra.mxu0 0.0
    %303 = vmatpush.msra.mxu0 0.0
    %304 = vmatpush.msra.mxu0 0.0
    %305 = vmatpush.msra.mxu0 0.0
    %306 = vmatpush.msra.mxu0 0.0
    %307 = vmatpush.msra.mxu0 0.0
    %308 = vmatpush.msra.mxu0 0.0
    %309 = vmatpush.msra.mxu0 %v114
    %310 = vmatmul.f32.gmra.mxu0 %v128
    %v311 = vpop.f32.mrf.mxu0
    %v312 = vadd.f32 %v120, %v311
    %313 = vmatmul.f32.gmra.mxu0 %v131
    %v314 = vpop.f32.mrf.mxu0
    %v315 = vadd.f32 %v125, %v314
    %316 = vdwg.mxu0
    %v317 = vld [vmem:[%s6] ss:$2 sm:$0x3]
    %v319 = vperm.slane %v317, 0
    %v320 = vperm.slane %v317, 1
    %s323 = scalar_lea.vmem %s6, 1
    %v324 = vld [vmem:[%s323] ss:$2 sm:$0x3]
    %v326 = vperm.slane %v324, 0
    %v327 = vperm.slane %v324, 1
    %v330 = vand.u32 2147483647, %v77
    %v331 = vand.u32 2147483647, %v100
    %v332 = vand.u32 2147483647, %v80
    %v333 = vand.u32 2147483647, %v103
    %v334 = vsub.f32 0.0, %v330
    %v335 = vsub.f32 0.0, %v331
    %v336 = vsub.f32 0.0, %v332
    %v337 = vsub.f32 0.0, %v333
    %v338 = vmul.f32 %v334, 1.442695
    %v339 = vpow.pop %v338
    %v340 = vmul.f32 %v335, 1.442695
    %v341 = vpow.pop %v340
    %v342 = vmul.f32 %v336, 1.442695
    %v343 = vpow.pop %v342
    %v344 = vmul.f32 %v337, 1.442695
    %v345 = vpow.pop %v344
    %v346 = vadd.f32 %v339, 1.0
    %v347 = vadd.f32 %v341, 1.0
    %v348 = vadd.f32 %v343, 1.0
    %v349 = vadd.f32 %v345, 1.0
    %v350 = vrcp.pop %v346
    %v351 = vrcp.pop %v347
    %v352 = vrcp.pop %v348
    %v353 = vrcp.pop %v349
    %vm354 = vcmp.ge.f32.partialorder %v77, 0.0
    %vm355 = vcmp.ge.f32.partialorder %v100, 0.0
    %vm356 = vcmp.ge.f32.partialorder %v80, 0.0
    %vm357 = vcmp.ge.f32.partialorder %v103, 0.0
    %v358 = vmul.f32 %v339, %v350
    %v359 = vmul.f32 %v341, %v351
    %v360 = vmul.f32 %v343, %v352
    %v361 = vmul.f32 %v345, %v353
    %v362 = vsel %vm354, %v350, %v358
    %v363 = vsel %vm355, %v351, %v359
    %v364 = vsel %vm356, %v352, %v360
    %v365 = vsel %vm357, %v353, %v361
    %v366 = vmax.f32 %v77, 0.0
    %v367 = vmax.f32 %v100, 0.0
    %v368 = vmax.f32 %v80, 0.0
    %v369 = vmax.f32 %v103, 0.0
    %v370 = vmul.f32 %v77, %v319
    %v371 = vmul.f32 %v100, %v320
    %v372 = vmul.f32 %v80, %v326
    %v373 = vmul.f32 %v103, %v327
    %v374 = vsub.f32 %v366, %v370
    %v375 = vsub.f32 %v367, %v371
    %v376 = vsub.f32 %v368, %v372
    %v377 = vsub.f32 %v369, %v373
    %v378 = vlog2.pop %v346
    %v379 = vmul.f32 %v378, 0.6931472
    %v380 = vlog2.pop %v347
    %v381 = vmul.f32 %v380, 0.6931472
    %v382 = vlog2.pop %v348
    %v383 = vmul.f32 %v382, 0.6931472
    %v384 = vlog2.pop %v349
    %v385 = vmul.f32 %v384, 0.6931472
    %v386 = vadd.f32 %v374, %v379
    %v387 = vadd.f32 %v375, %v381
    %v388 = vadd.f32 %v376, %v383
    %v389 = vadd.f32 %v377, %v385
    %v390 = vadd.f32 %v386, %v387
    %391 = vadd.xlane.f32.xlu0 %v390
    %v392 = vpop.xlane.xlu0 %391
    %v393 = vadd.f32 %v388, %v389
    %394 = vadd.xlane.f32.xlu0 %v393
    %v395 = vpop.xlane.xlu0 %394
    %v396 = vmul.f32 %v362, %v319
    %v397 = vmul.f32 %v363, %v320
    %v398 = vmul.f32 %v364, %v326
    %v399 = vmul.f32 %v365, %v327
    %v400 = vadd.f32 %v396, %v397
    %401 = vadd.xlane.f32.xlu0 %v400
    %v402 = vpop.xlane.xlu0 %401
    %v403 = vadd.f32 %v398, %v399
    %404 = vadd.xlane.f32.xlu0 %v403
    %v405 = vpop.xlane.xlu0 %404
    %v406 = vadd.f32 %v362, %v363
    %407 = vadd.xlane.f32.xlu0 %v406
    %v408 = vpop.xlane.xlu0 %407
    %v409 = vadd.f32 %v364, %v365
    %410 = vadd.xlane.f32.xlu0 %v409
    %v411 = vpop.xlane.xlu0 %410
    %v412 = vadd.f32 %v319, %v320
    %413 = vadd.xlane.f32.xlu0 %v412
    %v414 = vpop.xlane.xlu0 %413
    %v415 = vadd.f32 %v326, %v327
    %416 = vadd.xlane.f32.xlu0 %v415
    %v417 = vpop.xlane.xlu0 %416
    %v418 = vadd.f32 %v408, %v414
    %v419 = vadd.f32 %v411, %v417
    %v420 = vadd.f32 %v402, 1.0
    %v421 = vadd.f32 %v405, 1.0
    %v422 = vsub.f32 %v418, %v402
    %v423 = vsub.f32 %v419, %v405
    %v424 = vadd.f32 %v422, 1.0
    %v425 = vadd.f32 %v423, 1.0
    %v426 = vrcp.pop %v424
    %v427 = vrcp.pop %v425
    %v428 = vmul.f32 %v420, %v426
    %v429 = vmul.f32 %v421, %v427
    %v430 = vsub.f32 1.0, %v428
    %v431 = vsub.f32 1.0, %v429
    %v432 = vmul.f32 %v392, 0.00390625
    %v433 = vmul.f32 %v395, 0.00390625
    %v434 = vadd.f32 %v432, %v430
    %v435 = vadd.f32 %v433, %v431
    %v436 = vld [vmem:[%s8] sm:$0xff]
    %v437 = vld [vmem:[%s8 + $0x8] sm:$0xff]
    %v438 = vmul.f32 %v436, %v434
    %v439 = vmul.f32 %v437, %v435
    %vm440 = vcmask 7168
    %v441 = vsel %vm440, %v438, 0.0
    %v442 = vsel %vm440, %v439, 0.0
    %v443 = vadd.f32 %v441, %v442
    %444 = vadd.xlane.f32.xlu0 %v443
    %v445 = vpop.xlane.xlu0 %444
    %v446 = vrot.slane %v445, 4
    %v447 = vadd.f32 %v445, %v446
    %v448 = vrot.slane %v447, 2
    %v449 = vadd.f32 %v447, %v448
    %v450 = vrot.slane %v449, 1
    %v451 = vadd.f32 %v449, %v450
    %s452 = vtos %v451
    %s453 = scalar_lea.smem [#allocation2], 0
    %454 = sst [smem:[%s453]] %s452
    %v455 = vld [vmem:[%s7] sm:$0xff]
    %v456 = vld [vmem:[%s7 + $0x8] sm:$0xff]
    %v457 = vld [vmem:[%s7 + $0x10] sm:$0xff]
    %v458 = vld [vmem:[%s7 + $0x18] sm:$0xff]
    %v459 = vld [vmem:[%s7 + $0x20] sm:$0xff]
    %v460 = vld [vmem:[%s7 + $0x28] sm:$0xff]
    %v461 = vld [vmem:[%s7 + $0x30] sm:$0xff]
    %v462 = vld [vmem:[%s7 + $0x38] sm:$0xff]
    %v463 = vld [vmem:[%s7 + $0x40] sm:$0xff]
    %v464 = vld [vmem:[%s7 + $0x48] sm:$0xff]
    %v465 = vld [vmem:[%s7 + $0x50] sm:$0xff]
    %v466 = vld [vmem:[%s7 + $0x58] sm:$0xff]
    %v467 = vld [vmem:[%s7 + $0x60] sm:$0xff]
    %v468 = vld [vmem:[%s7 + $0x68] sm:$0xff]
    %v469 = vld [vmem:[%s7 + $0x70] sm:$0xff]
    %v470 = vld [vmem:[%s7 + $0x78] sm:$0xff]
    %v471 = vld [vmem:[%s7 + $0x80] sm:$0xff]
    %v472 = vld [vmem:[%s7 + $0x88] sm:$0xff]
    %v473 = vld [vmem:[%s7 + $0x90] sm:$0xff]
    %v474 = vld [vmem:[%s7 + $0x98] sm:$0xff]
    %v475 = vld [vmem:[%s7 + $0xa0] sm:$0xff]
    %v476 = vld [vmem:[%s7 + $0xa8] sm:$0xff]
    %v477 = vld [vmem:[%s7 + $0xb0] sm:$0xff]
    %v478 = vld [vmem:[%s7 + $0xb8] sm:$0xff]
    %v479 = vld [vmem:[%s7 + $0xc0] sm:$0xff]
    %v480 = vld [vmem:[%s7 + $0xc8] sm:$0xff]
    %v481 = vld [vmem:[%s7 + $0xd0] sm:$0xff]
    %v482 = vld [vmem:[%s7 + $0xd8] sm:$0xff]
    %v483 = vld [vmem:[%s7 + $0xe0] sm:$0xff]
    %v484 = vld [vmem:[%s7 + $0xe8] sm:$0xff]
    %v485 = vld [vmem:[%s7 + $0xf0] sm:$0xff]
    %v486 = vld [vmem:[%s7 + $0xf8] sm:$0xff]
    %v487 = vld [vmem:[%s7 + $0x100] sm:$0xff]
    %v488 = vld [vmem:[%s7 + $0x108] sm:$0xff]
    %v489 = vld [vmem:[%s7 + $0x110] sm:$0xff]
    %v490 = vld [vmem:[%s7 + $0x118] sm:$0xff]
    %v491 = vld [vmem:[%s7 + $0x120] sm:$0xff]
    %v492 = vld [vmem:[%s7 + $0x128] sm:$0xff]
    %v493 = vld [vmem:[%s7 + $0x130] sm:$0xff]
    %v494 = vld [vmem:[%s7 + $0x138] sm:$0xff]
    %v495 = vld [vmem:[%s7 + $0x140] sm:$0xff]
    %v496 = vld [vmem:[%s7 + $0x148] sm:$0xff]
    %v497 = vld [vmem:[%s7 + $0x150] sm:$0xff]
    %v498 = vld [vmem:[%s7 + $0x158] sm:$0xff]
    %v499 = vld [vmem:[%s7 + $0x160] sm:$0xff]
    %v500 = vld [vmem:[%s7 + $0x168] sm:$0xff]
    %v501 = vld [vmem:[%s7 + $0x170] sm:$0xff]
    %v502 = vld [vmem:[%s7 + $0x178] sm:$0xff]
    %v503 = vld [vmem:[%s7 + $0x180] sm:$0xff]
    %v504 = vld [vmem:[%s7 + $0x188] sm:$0xff]
    %v505 = vld [vmem:[%s7 + $0x190] sm:$0xff]
    %v506 = vld [vmem:[%s7 + $0x198] sm:$0xff]
    %v507 = vld [vmem:[%s7 + $0x1a0] sm:$0xff]
    %v508 = vld [vmem:[%s7 + $0x1a8] sm:$0xff]
    %v509 = vld [vmem:[%s7 + $0x1b0] sm:$0xff]
    %v510 = vld [vmem:[%s7 + $0x1b8] sm:$0xff]
    %v511 = vld [vmem:[%s7 + $0x1c0] sm:$0xff]
    %v512 = vld [vmem:[%s7 + $0x1c8] sm:$0xff]
    %v513 = vld [vmem:[%s7 + $0x1d0] sm:$0xff]
    %v514 = vld [vmem:[%s7 + $0x1d8] sm:$0xff]
    %v515 = vld [vmem:[%s7 + $0x1e0] sm:$0xff]
    %v516 = vld [vmem:[%s7 + $0x1e8] sm:$0xff]
    %v517 = vld [vmem:[%s7 + $0x1f0] sm:$0xff]
    %v518 = vld [vmem:[%s7 + $0x1f8] sm:$0xff]
    %v519 = vld [vmem:[%s7 + $0x200] sm:$0xff]
    %v520 = vld [vmem:[%s7 + $0x208] sm:$0xff]
    %v521 = vld [vmem:[%s7 + $0x210] sm:$0xff]
    %v522 = vld [vmem:[%s7 + $0x218] sm:$0xff]
    %v523 = vld [vmem:[%s7 + $0x220] sm:$0xff]
    %v524 = vld [vmem:[%s7 + $0x228] sm:$0xff]
    %v525 = vld [vmem:[%s7 + $0x230] sm:$0xff]
    %v526 = vld [vmem:[%s7 + $0x238] sm:$0xff]
    %v527 = vld [vmem:[%s7 + $0x240] sm:$0xff]
    %v528 = vld [vmem:[%s7 + $0x248] sm:$0xff]
    %v529 = vld [vmem:[%s7 + $0x250] sm:$0xff]
    %v530 = vld [vmem:[%s7 + $0x258] sm:$0xff]
    %v531 = vld [vmem:[%s7 + $0x260] sm:$0xff]
    %v532 = vld [vmem:[%s7 + $0x268] sm:$0xff]
    %v533 = vld [vmem:[%s7 + $0x270] sm:$0xff]
    %v534 = vld [vmem:[%s7 + $0x278] sm:$0xff]
    %v535 = vld [vmem:[%s7 + $0x280] sm:$0xff]
    %v536 = vld [vmem:[%s7 + $0x288] sm:$0xff]
    %v537 = vld [vmem:[%s7 + $0x290] sm:$0xff]
    %v538 = vld [vmem:[%s7 + $0x298] sm:$0xff]
    %v539 = vld [vmem:[%s7 + $0x2a0] sm:$0xff]
    %v540 = vld [vmem:[%s7 + $0x2a8] sm:$0xff]
    %v541 = vld [vmem:[%s7 + $0x2b0] sm:$0xff]
    %v542 = vld [vmem:[%s7 + $0x2b8] sm:$0xff]
    %v543 = vld [vmem:[%s7 + $0x2c0] sm:$0xff]
    %v544 = vld [vmem:[%s7 + $0x2c8] sm:$0xff]
    %v545 = vld [vmem:[%s7 + $0x2d0] sm:$0xff]
    %v546 = vld [vmem:[%s7 + $0x2d8] sm:$0xff]
    %v547 = vld [vmem:[%s7 + $0x2e0] sm:$0xff]
    %v548 = vld [vmem:[%s7 + $0x2e8] sm:$0xff]
    %v549 = vld [vmem:[%s7 + $0x2f0] sm:$0xff]
    %v550 = vld [vmem:[%s7 + $0x2f8] sm:$0xff]
    %v551 = vld [vmem:[%s7 + $0x300] sm:$0xff]
    %v552 = vld [vmem:[%s7 + $0x308] sm:$0xff]
    %v553 = vld [vmem:[%s7 + $0x310] sm:$0xff]
    %v554 = vld [vmem:[%s7 + $0x318] sm:$0xff]
    %v555 = vld [vmem:[%s7 + $0x320] sm:$0xff]
    %v556 = vld [vmem:[%s7 + $0x328] sm:$0xff]
    %v557 = vld [vmem:[%s7 + $0x330] sm:$0xff]
    %v558 = vld [vmem:[%s7 + $0x338] sm:$0xff]
    %v559 = vld [vmem:[%s7 + $0x340] sm:$0xff]
    %v560 = vld [vmem:[%s7 + $0x348] sm:$0xff]
    %v561 = vld [vmem:[%s7 + $0x350] sm:$0xff]
    %v562 = vld [vmem:[%s7 + $0x358] sm:$0xff]
    %v563 = vld [vmem:[%s7 + $0x360] sm:$0xff]
    %v564 = vld [vmem:[%s7 + $0x368] sm:$0xff]
    %v565 = vld [vmem:[%s7 + $0x370] sm:$0xff]
    %v566 = vld [vmem:[%s7 + $0x378] sm:$0xff]
    %v567 = vld [vmem:[%s7 + $0x380] sm:$0xff]
    %v568 = vld [vmem:[%s7 + $0x388] sm:$0xff]
    %v569 = vld [vmem:[%s7 + $0x390] sm:$0xff]
    %v570 = vld [vmem:[%s7 + $0x398] sm:$0xff]
    %v571 = vld [vmem:[%s7 + $0x3a0] sm:$0xff]
    %v572 = vld [vmem:[%s7 + $0x3a8] sm:$0xff]
    %v573 = vld [vmem:[%s7 + $0x3b0] sm:$0xff]
    %v574 = vld [vmem:[%s7 + $0x3b8] sm:$0xff]
    %v575 = vld [vmem:[%s7 + $0x3c0] sm:$0xff]
    %v576 = vld [vmem:[%s7 + $0x3c8] sm:$0xff]
    %v577 = vld [vmem:[%s7 + $0x3d0] sm:$0xff]
    %v578 = vld [vmem:[%s7 + $0x3d8] sm:$0xff]
    %v579 = vld [vmem:[%s7 + $0x3e0] sm:$0xff]
    %v580 = vld [vmem:[%s7 + $0x3e8] sm:$0xff]
    %v581 = vld [vmem:[%s7 + $0x3f0] sm:$0xff]
    %v582 = vld [vmem:[%s7 + $0x3f8] sm:$0xff]
    %v583 = vld [vmem:[%s7 + $0x400] sm:$0xff]
    %v584 = vld [vmem:[%s7 + $0x408] sm:$0xff]
    %v585 = vld [vmem:[%s7 + $0x410] sm:$0xff]
    %v586 = vld [vmem:[%s7 + $0x418] sm:$0xff]
    %v587 = vld [vmem:[%s7 + $0x420] sm:$0xff]
    %v588 = vld [vmem:[%s7 + $0x428] sm:$0xff]
    %v589 = vld [vmem:[%s7 + $0x430] sm:$0xff]
    %v590 = vld [vmem:[%s7 + $0x438] sm:$0xff]
    %v591 = vld [vmem:[%s7 + $0x440] sm:$0xff]
    %v592 = vld [vmem:[%s7 + $0x448] sm:$0xff]
    %v593 = vld [vmem:[%s7 + $0x450] sm:$0xff]
    %v594 = vld [vmem:[%s7 + $0x458] sm:$0xff]
    %v595 = vld [vmem:[%s7 + $0x460] sm:$0xff]
    %v596 = vld [vmem:[%s7 + $0x468] sm:$0xff]
    %v597 = vld [vmem:[%s7 + $0x470] sm:$0xff]
    %v598 = vld [vmem:[%s7 + $0x478] sm:$0xff]
    %v599 = vld [vmem:[%s7 + $0x480] sm:$0xff]
    %v600 = vld [vmem:[%s7 + $0x488] sm:$0xff]
    %v601 = vld [vmem:[%s7 + $0x490] sm:$0xff]
    %v602 = vld [vmem:[%s7 + $0x498] sm:$0xff]
    %v603 = vld [vmem:[%s7 + $0x4a0] sm:$0xff]
    %v604 = vld [vmem:[%s7 + $0x4a8] sm:$0xff]
    %v605 = vld [vmem:[%s7 + $0x4b0] sm:$0xff]
    %v606 = vld [vmem:[%s7 + $0x4b8] sm:$0xff]
    %v607 = vld [vmem:[%s7 + $0x4c0] sm:$0xff]
    %v608 = vld [vmem:[%s7 + $0x4c8] sm:$0xff]
    %v609 = vld [vmem:[%s7 + $0x4d0] sm:$0xff]
    %v610 = vld [vmem:[%s7 + $0x4d8] sm:$0xff]
    %v611 = vld [vmem:[%s7 + $0x4e0] sm:$0xff]
    %v612 = vld [vmem:[%s7 + $0x4e8] sm:$0xff]
    %v613 = vld [vmem:[%s7 + $0x4f0] sm:$0xff]
    %v614 = vld [vmem:[%s7 + $0x4f8] sm:$0xff]
    %v615 = vld [vmem:[%s7 + $0x500] sm:$0xff]
    %v616 = vld [vmem:[%s7 + $0x508] sm:$0xff]
    %v617 = vld [vmem:[%s7 + $0x510] sm:$0xff]
    %v618 = vld [vmem:[%s7 + $0x518] sm:$0xff]
    %v619 = vld [vmem:[%s7 + $0x520] sm:$0xff]
    %v620 = vld [vmem:[%s7 + $0x528] sm:$0xff]
    %v621 = vld [vmem:[%s7 + $0x530] sm:$0xff]
    %v622 = vld [vmem:[%s7 + $0x538] sm:$0xff]
    %v623 = vld [vmem:[%s7 + $0x540] sm:$0xff]
    %v624 = vld [vmem:[%s7 + $0x548] sm:$0xff]
    %v625 = vld [vmem:[%s7 + $0x550] sm:$0xff]
    %v626 = vld [vmem:[%s7 + $0x558] sm:$0xff]
    %v627 = vld [vmem:[%s7 + $0x560] sm:$0xff]
    %v628 = vld [vmem:[%s7 + $0x568] sm:$0xff]
    %v629 = vld [vmem:[%s7 + $0x570] sm:$0xff]
    %v630 = vld [vmem:[%s7 + $0x578] sm:$0xff]
    %v631 = vld [vmem:[%s7 + $0x580] sm:$0xff]
    %v632 = vld [vmem:[%s7 + $0x588] sm:$0xff]
    %v633 = vld [vmem:[%s7 + $0x590] sm:$0xff]
    %v634 = vld [vmem:[%s7 + $0x598] sm:$0xff]
    %v635 = vld [vmem:[%s7 + $0x5a0] sm:$0xff]
    %v636 = vld [vmem:[%s7 + $0x5a8] sm:$0xff]
    %v637 = vld [vmem:[%s7 + $0x5b0] sm:$0xff]
    %v638 = vld [vmem:[%s7 + $0x5b8] sm:$0xff]
    %v639 = vld [vmem:[%s7 + $0x5c0] sm:$0xff]
    %v640 = vld [vmem:[%s7 + $0x5c8] sm:$0xff]
    %v641 = vld [vmem:[%s7 + $0x5d0] sm:$0xff]
    %v642 = vld [vmem:[%s7 + $0x5d8] sm:$0xff]
    %v643 = vld [vmem:[%s7 + $0x5e0] sm:$0xff]
    %v644 = vld [vmem:[%s7 + $0x5e8] sm:$0xff]
    %v645 = vld [vmem:[%s7 + $0x5f0] sm:$0xff]
    %v646 = vld [vmem:[%s7 + $0x5f8] sm:$0xff]
    %v647 = vld [vmem:[%s7 + $0x600] sm:$0xff]
    %v648 = vld [vmem:[%s7 + $0x608] sm:$0xff]
    %v649 = vld [vmem:[%s7 + $0x610] sm:$0xff]
    %v650 = vld [vmem:[%s7 + $0x618] sm:$0xff]
    %v651 = vld [vmem:[%s7 + $0x620] sm:$0xff]
    %v652 = vld [vmem:[%s7 + $0x628] sm:$0xff]
    %v653 = vld [vmem:[%s7 + $0x630] sm:$0xff]
    %v654 = vld [vmem:[%s7 + $0x638] sm:$0xff]
    %v655 = vld [vmem:[%s7 + $0x640] sm:$0xff]
    %v656 = vld [vmem:[%s7 + $0x648] sm:$0xff]
    %v657 = vld [vmem:[%s7 + $0x650] sm:$0xff]
    %v658 = vld [vmem:[%s7 + $0x658] sm:$0xff]
    %v659 = vld [vmem:[%s7 + $0x660] sm:$0xff]
    %v660 = vld [vmem:[%s7 + $0x668] sm:$0xff]
    %v661 = vld [vmem:[%s7 + $0x670] sm:$0xff]
    %v662 = vld [vmem:[%s7 + $0x678] sm:$0xff]
    %v663 = vld [vmem:[%s7 + $0x680] sm:$0xff]
    %v664 = vld [vmem:[%s7 + $0x688] sm:$0xff]
    %v665 = vld [vmem:[%s7 + $0x690] sm:$0xff]
    %v666 = vld [vmem:[%s7 + $0x698] sm:$0xff]
    %v667 = vld [vmem:[%s7 + $0x6a0] sm:$0xff]
    %v668 = vld [vmem:[%s7 + $0x6a8] sm:$0xff]
    %v669 = vld [vmem:[%s7 + $0x6b0] sm:$0xff]
    %v670 = vld [vmem:[%s7 + $0x6b8] sm:$0xff]
    %v671 = vld [vmem:[%s7 + $0x6c0] sm:$0xff]
    %v672 = vld [vmem:[%s7 + $0x6c8] sm:$0xff]
    %v673 = vld [vmem:[%s7 + $0x6d0] sm:$0xff]
    %v674 = vld [vmem:[%s7 + $0x6d8] sm:$0xff]
    %v675 = vld [vmem:[%s7 + $0x6e0] sm:$0xff]
    %v676 = vld [vmem:[%s7 + $0x6e8] sm:$0xff]
    %v677 = vld [vmem:[%s7 + $0x6f0] sm:$0xff]
    %v678 = vld [vmem:[%s7 + $0x6f8] sm:$0xff]
    %v679 = vld [vmem:[%s7 + $0x700] sm:$0xff]
    %v680 = vld [vmem:[%s7 + $0x708] sm:$0xff]
    %v681 = vld [vmem:[%s7 + $0x710] sm:$0xff]
    %v682 = vld [vmem:[%s7 + $0x718] sm:$0xff]
    %v683 = vld [vmem:[%s7 + $0x720] sm:$0xff]
    %v684 = vld [vmem:[%s7 + $0x728] sm:$0xff]
    %v685 = vld [vmem:[%s7 + $0x730] sm:$0xff]
    %v686 = vld [vmem:[%s7 + $0x738] sm:$0xff]
    %v687 = vld [vmem:[%s7 + $0x740] sm:$0xff]
    %v688 = vld [vmem:[%s7 + $0x748] sm:$0xff]
    %v689 = vld [vmem:[%s7 + $0x750] sm:$0xff]
    %v690 = vld [vmem:[%s7 + $0x758] sm:$0xff]
    %v691 = vld [vmem:[%s7 + $0x760] sm:$0xff]
    %v692 = vld [vmem:[%s7 + $0x768] sm:$0xff]
    %v693 = vld [vmem:[%s7 + $0x770] sm:$0xff]
    %v694 = vld [vmem:[%s7 + $0x778] sm:$0xff]
    %v695 = vld [vmem:[%s7 + $0x780] sm:$0xff]
    %v696 = vld [vmem:[%s7 + $0x788] sm:$0xff]
    %v697 = vld [vmem:[%s7 + $0x790] sm:$0xff]
    %v698 = vld [vmem:[%s7 + $0x798] sm:$0xff]
    %v699 = vld [vmem:[%s7 + $0x7a0] sm:$0xff]
    %v700 = vld [vmem:[%s7 + $0x7a8] sm:$0xff]
    %v701 = vld [vmem:[%s7 + $0x7b0] sm:$0xff]
    %v702 = vld [vmem:[%s7 + $0x7b8] sm:$0xff]
    %v703 = vld [vmem:[%s7 + $0x7c0] sm:$0xff]
    %v704 = vld [vmem:[%s7 + $0x7c8] sm:$0xff]
    %v705 = vld [vmem:[%s7 + $0x7d0] sm:$0xff]
    %v706 = vld [vmem:[%s7 + $0x7d8] sm:$0xff]
    %v707 = vld [vmem:[%s7 + $0x7e0] sm:$0xff]
    %v708 = vld [vmem:[%s7 + $0x7e8] sm:$0xff]
    %v709 = vld [vmem:[%s7 + $0x7f0] sm:$0xff]
    %v710 = vld [vmem:[%s7 + $0x7f8] sm:$0xff]
    %711 = vmatpush.msra.mxu0 %v575
    %712 = vmatpush.msra.mxu0 %v567
    %713 = vmatpush.msra.mxu0 %v559
    %714 = vmatpush.msra.mxu0 %v551
    %715 = vmatpush.msra.mxu0 %v543
    %716 = vmatpush.msra.mxu0 %v535
    %717 = vmatpush.msra.mxu0 %v527
    %718 = vmatpush.msra.mxu0 %v519
    %719 = vmatpush.msra.mxu0 %v511
    %720 = vmatpush.msra.mxu0 %v503
    %721 = vmatpush.msra.mxu0 %v495
    %722 = vmatpush.msra.mxu0 %v487
    %723 = vmatpush.msra.mxu0 %v479
    %724 = vmatpush.msra.mxu0 %v471
    %725 = vmatpush.msra.mxu0 %v463
    %726 = vmatpush.msra.mxu0 %v455
    %727 = vmatmul.f32.gmra.mxu0 %v77
    %v728 = vpop.f32.mrf.mxu0
    %v729 = vadd.f32 0.0, %v728
    %730 = vmatmul.f32.gmra.mxu0 %v80
    %v731 = vpop.f32.mrf.mxu0
    %v732 = vadd.f32 0.0, %v731
    %733 = vdwg.mxu0
    %734 = vmatpush.msra.mxu0 %v703
    %735 = vmatpush.msra.mxu0 %v695
    %736 = vmatpush.msra.mxu0 %v687
    %737 = vmatpush.msra.mxu0 %v679
    %738 = vmatpush.msra.mxu0 %v671
    %739 = vmatpush.msra.mxu0 %v663
    %740 = vmatpush.msra.mxu0 %v655
    %741 = vmatpush.msra.mxu0 %v647
    %742 = vmatpush.msra.mxu0 %v639
    %743 = vmatpush.msra.mxu0 %v631
    %744 = vmatpush.msra.mxu0 %v623
    %745 = vmatpush.msra.mxu0 %v615
    %746 = vmatpush.msra.mxu0 %v607
    %747 = vmatpush.msra.mxu0 %v599
    %748 = vmatpush.msra.mxu0 %v591
    %749 = vmatpush.msra.mxu0 %v583
    %750 = vmatmul.f32.gmra.mxu0 %v100
    %v751 = vpop.f32.mrf.mxu0
    %v752 = vadd.f32 %v729, %v751
    %753 = vmatmul.f32.gmra.mxu0 %v103
    %v754 = vpop.f32.mrf.mxu0
    %v755 = vadd.f32 %v732, %v754
    %756 = vdwg.mxu0
    %757 = vmatpush.msra.mxu0 %v576
    %758 = vmatpush.msra.mxu0 %v568
    %759 = vmatpush.msra.mxu0 %v560
    %760 = vmatpush.msra.mxu0 %v552
    %761 = vmatpush.msra.mxu0 %v544
    %762 = vmatpush.msra.mxu0 %v536
    %763 = vmatpush.msra.mxu0 %v528
    %764 = vmatpush.msra.mxu0 %v520
    %765 = vmatpush.msra.mxu0 %v512
    %766 = vmatpush.msra.mxu0 %v504
    %767 = vmatpush.msra.mxu0 %v496
    %768 = vmatpush.msra.mxu0 %v488
    %769 = vmatpush.msra.mxu0 %v480
    %770 = vmatpush.msra.mxu0 %v472
    %771 = vmatpush.msra.mxu0 %v464
    %772 = vmatpush.msra.mxu0 %v456
    %773 = vmatmul.f32.gmra.mxu0 %v77
    %v774 = vpop.f32.mrf.mxu0
    %v775 = vadd.f32 0.0, %v774
    %776 = vmatmul.f32.gmra.mxu0 %v80
    %v777 = vpop.f32.mrf.mxu0
    %v778 = vadd.f32 0.0, %v777
    %779 = vdwg.mxu0
    %780 = vmatpush.msra.mxu0 %v704
    %781 = vmatpush.msra.mxu0 %v696
    %782 = vmatpush.msra.mxu0 %v688
    %783 = vmatpush.msra.mxu0 %v680
    %784 = vmatpush.msra.mxu0 %v672
    %785 = vmatpush.msra.mxu0 %v664
    %786 = vmatpush.msra.mxu0 %v656
    %787 = vmatpush.msra.mxu0 %v648
    %788 = vmatpush.msra.mxu0 %v640
    %789 = vmatpush.msra.mxu0 %v632
    %790 = vmatpush.msra.mxu0 %v624
    %791 = vmatpush.msra.mxu0 %v616
    %792 = vmatpush.msra.mxu0 %v608
    %793 = vmatpush.msra.mxu0 %v600
    %794 = vmatpush.msra.mxu0 %v592
    %795 = vmatpush.msra.mxu0 %v584
    %796 = vmatmul.f32.gmra.mxu0 %v100
    %v797 = vpop.f32.mrf.mxu0
    %v798 = vadd.f32 %v775, %v797
    %799 = vmatmul.f32.gmra.mxu0 %v103
    %v800 = vpop.f32.mrf.mxu0
    %v801 = vadd.f32 %v778, %v800
    %802 = vdwg.mxu0
    %803 = vmatpush.msra.mxu0 %v577
    %804 = vmatpush.msra.mxu0 %v569
    %805 = vmatpush.msra.mxu0 %v561
    %806 = vmatpush.msra.mxu0 %v553
    %807 = vmatpush.msra.mxu0 %v545
    %808 = vmatpush.msra.mxu0 %v537
    %809 = vmatpush.msra.mxu0 %v529
    %810 = vmatpush.msra.mxu0 %v521
    %811 = vmatpush.msra.mxu0 %v513
    %812 = vmatpush.msra.mxu0 %v505
    %813 = vmatpush.msra.mxu0 %v497
    %814 = vmatpush.msra.mxu0 %v489
    %815 = vmatpush.msra.mxu0 %v481
    %816 = vmatpush.msra.mxu0 %v473
    %817 = vmatpush.msra.mxu0 %v465
    %818 = vmatpush.msra.mxu0 %v457
    %819 = vmatmul.f32.gmra.mxu0 %v77
    %v820 = vpop.f32.mrf.mxu0
    %v821 = vadd.f32 0.0, %v820
    %822 = vmatmul.f32.gmra.mxu0 %v80
    %v823 = vpop.f32.mrf.mxu0
    %v824 = vadd.f32 0.0, %v823
    %825 = vdwg.mxu0
    %826 = vmatpush.msra.mxu0 %v705
    %827 = vmatpush.msra.mxu0 %v697
    %828 = vmatpush.msra.mxu0 %v689
    %829 = vmatpush.msra.mxu0 %v681
    %830 = vmatpush.msra.mxu0 %v673
    %831 = vmatpush.msra.mxu0 %v665
    %832 = vmatpush.msra.mxu0 %v657
    %833 = vmatpush.msra.mxu0 %v649
    %834 = vmatpush.msra.mxu0 %v641
    %835 = vmatpush.msra.mxu0 %v633
    %836 = vmatpush.msra.mxu0 %v625
    %837 = vmatpush.msra.mxu0 %v617
    %838 = vmatpush.msra.mxu0 %v609
    %839 = vmatpush.msra.mxu0 %v601
    %840 = vmatpush.msra.mxu0 %v593
    %841 = vmatpush.msra.mxu0 %v585
    %842 = vmatmul.f32.gmra.mxu0 %v100
    %v843 = vpop.f32.mrf.mxu0
    %v844 = vadd.f32 %v821, %v843
    %845 = vmatmul.f32.gmra.mxu0 %v103
    %v846 = vpop.f32.mrf.mxu0
    %v847 = vadd.f32 %v824, %v846
    %848 = vdwg.mxu0
    %849 = vmatpush.msra.mxu0 %v578
    %850 = vmatpush.msra.mxu0 %v570
    %851 = vmatpush.msra.mxu0 %v562
    %852 = vmatpush.msra.mxu0 %v554
    %853 = vmatpush.msra.mxu0 %v546
    %854 = vmatpush.msra.mxu0 %v538
    %855 = vmatpush.msra.mxu0 %v530
    %856 = vmatpush.msra.mxu0 %v522
    %857 = vmatpush.msra.mxu0 %v514
    %858 = vmatpush.msra.mxu0 %v506
    %859 = vmatpush.msra.mxu0 %v498
    %860 = vmatpush.msra.mxu0 %v490
    %861 = vmatpush.msra.mxu0 %v482
    %862 = vmatpush.msra.mxu0 %v474
    %863 = vmatpush.msra.mxu0 %v466
    %864 = vmatpush.msra.mxu0 %v458
    %865 = vmatmul.f32.gmra.mxu0 %v77
    %v866 = vpop.f32.mrf.mxu0
    %v867 = vadd.f32 0.0, %v866
    %868 = vmatmul.f32.gmra.mxu0 %v80
    %v869 = vpop.f32.mrf.mxu0
    %v870 = vadd.f32 0.0, %v869
    %871 = vdwg.mxu0
    %872 = vmatpush.msra.mxu0 %v706
    %873 = vmatpush.msra.mxu0 %v698
    %874 = vmatpush.msra.mxu0 %v690
    %875 = vmatpush.msra.mxu0 %v682
    %876 = vmatpush.msra.mxu0 %v674
    %877 = vmatpush.msra.mxu0 %v666
    %878 = vmatpush.msra.mxu0 %v658
    %879 = vmatpush.msra.mxu0 %v650
    %880 = vmatpush.msra.mxu0 %v642
    %881 = vmatpush.msra.mxu0 %v634
    %882 = vmatpush.msra.mxu0 %v626
    %883 = vmatpush.msra.mxu0 %v618
    %884 = vmatpush.msra.mxu0 %v610
    %885 = vmatpush.msra.mxu0 %v602
    %886 = vmatpush.msra.mxu0 %v594
    %887 = vmatpush.msra.mxu0 %v586
    %888 = vmatmul.f32.gmra.mxu0 %v100
    %v889 = vpop.f32.mrf.mxu0
    %v890 = vadd.f32 %v867, %v889
    %891 = vmatmul.f32.gmra.mxu0 %v103
    %v892 = vpop.f32.mrf.mxu0
    %v893 = vadd.f32 %v870, %v892
    %894 = vdwg.mxu0
    %895 = vmatpush.msra.mxu0 %v579
    %896 = vmatpush.msra.mxu0 %v571
    %897 = vmatpush.msra.mxu0 %v563
    %898 = vmatpush.msra.mxu0 %v555
    %899 = vmatpush.msra.mxu0 %v547
    %900 = vmatpush.msra.mxu0 %v539
    %901 = vmatpush.msra.mxu0 %v531
    %902 = vmatpush.msra.mxu0 %v523
    %903 = vmatpush.msra.mxu0 %v515
    %904 = vmatpush.msra.mxu0 %v507
    %905 = vmatpush.msra.mxu0 %v499
    %906 = vmatpush.msra.mxu0 %v491
    %907 = vmatpush.msra.mxu0 %v483
    %908 = vmatpush.msra.mxu0 %v475
    %909 = vmatpush.msra.mxu0 %v467
    %910 = vmatpush.msra.mxu0 %v459
    %911 = vmatmul.f32.gmra.mxu0 %v77
    %v912 = vpop.f32.mrf.mxu0
    %v913 = vadd.f32 0.0, %v912
    %914 = vmatmul.f32.gmra.mxu0 %v80
    %v915 = vpop.f32.mrf.mxu0
    %v916 = vadd.f32 0.0, %v915
    %917 = vdwg.mxu0
    %918 = vmatpush.msra.mxu0 %v707
    %919 = vmatpush.msra.mxu0 %v699
    %920 = vmatpush.msra.mxu0 %v691
    %921 = vmatpush.msra.mxu0 %v683
    %922 = vmatpush.msra.mxu0 %v675
    %923 = vmatpush.msra.mxu0 %v667
    %924 = vmatpush.msra.mxu0 %v659
    %925 = vmatpush.msra.mxu0 %v651
    %926 = vmatpush.msra.mxu0 %v643
    %927 = vmatpush.msra.mxu0 %v635
    %928 = vmatpush.msra.mxu0 %v627
    %929 = vmatpush.msra.mxu0 %v619
    %930 = vmatpush.msra.mxu0 %v611
    %931 = vmatpush.msra.mxu0 %v603
    %932 = vmatpush.msra.mxu0 %v595
    %933 = vmatpush.msra.mxu0 %v587
    %934 = vmatmul.f32.gmra.mxu0 %v100
    %v935 = vpop.f32.mrf.mxu0
    %v936 = vadd.f32 %v913, %v935
    %937 = vmatmul.f32.gmra.mxu0 %v103
    %v938 = vpop.f32.mrf.mxu0
    %v939 = vadd.f32 %v916, %v938
    %940 = vdwg.mxu0
    %941 = vmatpush.msra.mxu0 %v580
    %942 = vmatpush.msra.mxu0 %v572
    %943 = vmatpush.msra.mxu0 %v564
    %944 = vmatpush.msra.mxu0 %v556
    %945 = vmatpush.msra.mxu0 %v548
    %946 = vmatpush.msra.mxu0 %v540
    %947 = vmatpush.msra.mxu0 %v532
    %948 = vmatpush.msra.mxu0 %v524
    %949 = vmatpush.msra.mxu0 %v516
    %950 = vmatpush.msra.mxu0 %v508
    %951 = vmatpush.msra.mxu0 %v500
    %952 = vmatpush.msra.mxu0 %v492
    %953 = vmatpush.msra.mxu0 %v484
    %954 = vmatpush.msra.mxu0 %v476
    %955 = vmatpush.msra.mxu0 %v468
    %956 = vmatpush.msra.mxu0 %v460
    %957 = vmatmul.f32.gmra.mxu0 %v77
    %v958 = vpop.f32.mrf.mxu0
    %v959 = vadd.f32 0.0, %v958
    %960 = vmatmul.f32.gmra.mxu0 %v80
    %v961 = vpop.f32.mrf.mxu0
    %v962 = vadd.f32 0.0, %v961
    %963 = vdwg.mxu0
    %964 = vmatpush.msra.mxu0 %v708
    %965 = vmatpush.msra.mxu0 %v700
    %966 = vmatpush.msra.mxu0 %v692
    %967 = vmatpush.msra.mxu0 %v684
    %968 = vmatpush.msra.mxu0 %v676
    %969 = vmatpush.msra.mxu0 %v668
    %970 = vmatpush.msra.mxu0 %v660
    %971 = vmatpush.msra.mxu0 %v652
    %972 = vmatpush.msra.mxu0 %v644
    %973 = vmatpush.msra.mxu0 %v636
    %974 = vmatpush.msra.mxu0 %v628
    %975 = vmatpush.msra.mxu0 %v620
    %976 = vmatpush.msra.mxu0 %v612
    %977 = vmatpush.msra.mxu0 %v604
    %978 = vmatpush.msra.mxu0 %v596
    %979 = vmatpush.msra.mxu0 %v588
    %980 = vmatmul.f32.gmra.mxu0 %v100
    %v981 = vpop.f32.mrf.mxu0
    %v982 = vadd.f32 %v959, %v981
    %983 = vmatmul.f32.gmra.mxu0 %v103
    %v984 = vpop.f32.mrf.mxu0
    %v985 = vadd.f32 %v962, %v984
    %986 = vdwg.mxu0
    %987 = vmatpush.msra.mxu0 %v581
    %988 = vmatpush.msra.mxu0 %v573
    %989 = vmatpush.msra.mxu0 %v565
    %990 = vmatpush.msra.mxu0 %v557
    %991 = vmatpush.msra.mxu0 %v549
    %992 = vmatpush.msra.mxu0 %v541
    %993 = vmatpush.msra.mxu0 %v533
    %994 = vmatpush.msra.mxu0 %v525
    %995 = vmatpush.msra.mxu0 %v517
    %996 = vmatpush.msra.mxu0 %v509
    %997 = vmatpush.msra.mxu0 %v501
    %998 = vmatpush.msra.mxu0 %v493
    %999 = vmatpush.msra.mxu0 %v485
    %1000 = vmatpush.msra.mxu0 %v477
    %1001 = vmatpush.msra.mxu0 %v469
    %1002 = vmatpush.msra.mxu0 %v461
    %1003 = vmatmul.f32.gmra.mxu0 %v77
    %v1004 = vpop.f32.mrf.mxu0
    %v1005 = vadd.f32 0.0, %v1004
    %1006 = vmatmul.f32.gmra.mxu0 %v80
    %v1007 = vpop.f32.mrf.mxu0
    %v1008 = vadd.f32 0.0, %v1007
    %1009 = vdwg.mxu0
    %1010 = vmatpush.msra.mxu0 %v709
    %1011 = vmatpush.msra.mxu0 %v701
    %1012 = vmatpush.msra.mxu0 %v693
    %1013 = vmatpush.msra.mxu0 %v685
    %1014 = vmatpush.msra.mxu0 %v677
    %1015 = vmatpush.msra.mxu0 %v669
    %1016 = vmatpush.msra.mxu0 %v661
    %1017 = vmatpush.msra.mxu0 %v653
    %1018 = vmatpush.msra.mxu0 %v645
    %1019 = vmatpush.msra.mxu0 %v637
    %1020 = vmatpush.msra.mxu0 %v629
    %1021 = vmatpush.msra.mxu0 %v621
    %1022 = vmatpush.msra.mxu0 %v613
    %1023 = vmatpush.msra.mxu0 %v605
    %1024 = vmatpush.msra.mxu0 %v597
    %1025 = vmatpush.msra.mxu0 %v589
    %1026 = vmatmul.f32.gmra.mxu0 %v100
    %v1027 = vpop.f32.mrf.mxu0
    %v1028 = vadd.f32 %v1005, %v1027
    %1029 = vmatmul.f32.gmra.mxu0 %v103
    %v1030 = vpop.f32.mrf.mxu0
    %v1031 = vadd.f32 %v1008, %v1030
    %1032 = vdwg.mxu0
    %1033 = vmatpush.msra.mxu0 %v582
    %1034 = vmatpush.msra.mxu0 %v574
    %1035 = vmatpush.msra.mxu0 %v566
    %1036 = vmatpush.msra.mxu0 %v558
    %1037 = vmatpush.msra.mxu0 %v550
    %1038 = vmatpush.msra.mxu0 %v542
    %1039 = vmatpush.msra.mxu0 %v534
    %1040 = vmatpush.msra.mxu0 %v526
    %1041 = vmatpush.msra.mxu0 %v518
    %1042 = vmatpush.msra.mxu0 %v510
    %1043 = vmatpush.msra.mxu0 %v502
    %1044 = vmatpush.msra.mxu0 %v494
    %1045 = vmatpush.msra.mxu0 %v486
    %1046 = vmatpush.msra.mxu0 %v478
    %1047 = vmatpush.msra.mxu0 %v470
    %1048 = vmatpush.msra.mxu0 %v462
    %1049 = vmatmul.f32.gmra.mxu0 %v77
    %v1050 = vpop.f32.mrf.mxu0
    %v1051 = vadd.f32 0.0, %v1050
    %1052 = vmatmul.f32.gmra.mxu0 %v80
    %v1053 = vpop.f32.mrf.mxu0
    %v1054 = vadd.f32 0.0, %v1053
    %1055 = vdwg.mxu0
    %1056 = vmatpush.msra.mxu0 %v710
    %1057 = vmatpush.msra.mxu0 %v702
    %1058 = vmatpush.msra.mxu0 %v694
    %1059 = vmatpush.msra.mxu0 %v686
    %1060 = vmatpush.msra.mxu0 %v678
    %1061 = vmatpush.msra.mxu0 %v670
    %1062 = vmatpush.msra.mxu0 %v662
    %1063 = vmatpush.msra.mxu0 %v654
    %1064 = vmatpush.msra.mxu0 %v646
    %1065 = vmatpush.msra.mxu0 %v638
    %1066 = vmatpush.msra.mxu0 %v630
    %1067 = vmatpush.msra.mxu0 %v622
    %1068 = vmatpush.msra.mxu0 %v614
    %1069 = vmatpush.msra.mxu0 %v606
    %1070 = vmatpush.msra.mxu0 %v598
    %1071 = vmatpush.msra.mxu0 %v590
    %1072 = vmatmul.f32.gmra.mxu0 %v100
    %v1073 = vpop.f32.mrf.mxu0
    %v1074 = vadd.f32 %v1051, %v1073
    %1075 = vmatmul.f32.gmra.mxu0 %v103
    %v1076 = vpop.f32.mrf.mxu0
    %v1077 = vadd.f32 %v1054, %v1076
    %1078 = vdwg.mxu0
    %v1079 = vadd.f32 %v752, %v798
    %v1080 = vadd.f32 %v1079, %v844
    %v1081 = vadd.f32 %v1080, %v890
    %v1082 = vadd.f32 %v1081, %v936
    %v1083 = vadd.f32 %v1082, %v982
    %v1084 = vadd.f32 %v1083, %v1028
    %v1085 = vadd.f32 %v1084, %v1074
    %1086 = vadd.xlane.f32.xlu0 %v1085
    %v1087 = vpop.xlane.xlu0 %1086
    %v1088 = vadd.f32 %v755, %v801
    %v1089 = vadd.f32 %v1088, %v847
    %v1090 = vadd.f32 %v1089, %v893
    %v1091 = vadd.f32 %v1090, %v939
    %v1092 = vadd.f32 %v1091, %v985
    %v1093 = vadd.f32 %v1092, %v1031
    %v1094 = vadd.f32 %v1093, %v1077
    %1095 = vadd.xlane.f32.xlu0 %v1094
    %v1096 = vpop.xlane.xlu0 %1095
    %v1097 = vmul.f32 %v752, %v752
    %v1098 = vmul.f32 %v798, %v798
    %v1099 = vmul.f32 %v844, %v844
    %v1100 = vmul.f32 %v890, %v890
    %v1101 = vmul.f32 %v936, %v936
    %v1102 = vmul.f32 %v982, %v982
    %v1103 = vmul.f32 %v1028, %v1028
    %v1104 = vmul.f32 %v1074, %v1074
    %v1105 = vmul.f32 %v755, %v755
    %v1106 = vmul.f32 %v801, %v801
    %v1107 = vmul.f32 %v847, %v847
    %v1108 = vmul.f32 %v893, %v893
    %v1109 = vmul.f32 %v939, %v939
    %v1110 = vmul.f32 %v985, %v985
    %v1111 = vmul.f32 %v1031, %v1031
    %v1112 = vmul.f32 %v1077, %v1077
    %v1113 = vadd.f32 %v1097, %v1098
    %v1114 = vadd.f32 %v1113, %v1099
    %v1115 = vadd.f32 %v1114, %v1100
    %v1116 = vadd.f32 %v1115, %v1101
    %v1117 = vadd.f32 %v1116, %v1102
    %v1118 = vadd.f32 %v1117, %v1103
    %v1119 = vadd.f32 %v1118, %v1104
    %1120 = vadd.xlane.f32.xlu0 %v1119
    %v1121 = vpop.xlane.xlu0 %1120
    %v1122 = vadd.f32 %v1105, %v1106
    %v1123 = vadd.f32 %v1122, %v1107
    %v1124 = vadd.f32 %v1123, %v1108
    %v1125 = vadd.f32 %v1124, %v1109
    %v1126 = vadd.f32 %v1125, %v1110
    %v1127 = vadd.f32 %v1126, %v1111
    %v1128 = vadd.f32 %v1127, %v1112
    %1129 = vadd.xlane.f32.xlu0 %v1128
    %v1130 = vpop.xlane.xlu0 %1129
    %v1131 = vmul.f32 %v1087, 0.0009765625
    %v1132 = vmul.f32 %v1096, 0.0009765625
    %v1133 = vmul.f32 %v1087, %v1131
    %v1134 = vmul.f32 %v1096, %v1132
    %v1135 = vsub.f32 %v1121, %v1133
    %v1136 = vsub.f32 %v1130, %v1134
    %v1137 = vmul.f32 %v1135, 0.0009775171
    %v1138 = vmul.f32 %v1136, 0.0009775171
    %v1139 = vmax.f32 %v1137, 0.0
    %v1140 = vmax.f32 %v1138, 0.0
    %v1141 = vrsqrt.pop %v1139
    %v1142 = vmul.f32 %v1141, %v1139
    %v1143 = vmul.f32 %v1142, %v1141
    %v1144 = vmul.f32 0.5, %v1143
    %v1145 = vsub.f32 1.5, %v1144
    %v1146 = vmul.f32 %v1141, %v1145
    %v1147 = vmul.f32 %v1139, %v1146
    %vm1148 = vcmp.eq.f32.partialorder %v1139, inf
    %v1149 = vsel %vm1148, %v1139, %v1147
    %vm1150 = vcmp.eq.f32.partialorder %v1139, 0.0
    %v1151 = vand.u32 %v1139, 2147483648
    %v1152 = vsel %vm1150, %v1151, %v1149
    %v1153 = vrsqrt.pop %v1140
    %v1154 = vmul.f32 %v1153, %v1140
    %v1155 = vmul.f32 %v1154, %v1153
    %v1156 = vmul.f32 0.5, %v1155
    %v1157 = vsub.f32 1.5, %v1156
    %v1158 = vmul.f32 %v1153, %v1157
    %v1159 = vmul.f32 %v1140, %v1158
    %vm1160 = vcmp.eq.f32.partialorder %v1140, inf
    %v1161 = vsel %vm1160, %v1140, %v1159
    %vm1162 = vcmp.eq.f32.partialorder %v1140, 0.0
    %v1163 = vand.u32 %v1140, 2147483648
    %v1164 = vsel %vm1162, %v1163, %v1161
    %v1165 = vadd.f32 %v1152, 1e-07
    %v1166 = vadd.f32 %v1164, 1e-07
    %v1167 = vrcp.pop %v1165
    %v1168 = vrcp.pop %v1166
    %v1169 = vmul.f32 %v1167, 0.25
    %v1170 = vmul.f32 %v1168, 0.25
    %v1171 = vsub.f32 %v752, %v1131
    %v1172 = vsub.f32 %v798, %v1131
    %v1173 = vsub.f32 %v844, %v1131
    %v1174 = vsub.f32 %v890, %v1131
    %v1175 = vsub.f32 %v936, %v1131
    %v1176 = vsub.f32 %v982, %v1131
    %v1177 = vsub.f32 %v1028, %v1131
    %v1178 = vsub.f32 %v1074, %v1131
    %v1179 = vsub.f32 %v755, %v1132
    %v1180 = vsub.f32 %v801, %v1132
    %v1181 = vsub.f32 %v847, %v1132
    %v1182 = vsub.f32 %v893, %v1132
    %v1183 = vsub.f32 %v939, %v1132
    %v1184 = vsub.f32 %v985, %v1132
    %v1185 = vsub.f32 %v1031, %v1132
    %v1186 = vsub.f32 %v1077, %v1132
    %v1187 = vmul.f32 %v1171, %v1169
    %v1188 = vmul.f32 %v1172, %v1169
    %v1189 = vmul.f32 %v1173, %v1169
    %v1190 = vmul.f32 %v1174, %v1169
    %v1191 = vmul.f32 %v1175, %v1169
    %v1192 = vmul.f32 %v1176, %v1169
    %v1193 = vmul.f32 %v1177, %v1169
    %v1194 = vmul.f32 %v1178, %v1169
    %v1195 = vmul.f32 %v1179, %v1170
    %v1196 = vmul.f32 %v1180, %v1170
    %v1197 = vmul.f32 %v1181, %v1170
    %v1198 = vmul.f32 %v1182, %v1170
    %v1199 = vmul.f32 %v1183, %v1170
    %v1200 = vmul.f32 %v1184, %v1170
    %v1201 = vmul.f32 %v1185, %v1170
    %v1202 = vmul.f32 %v1186, %v1170
    %v1203 = vadd.f32 %v151, %v174
    %v1204 = vadd.f32 %v1203, %v197
    %v1205 = vadd.f32 %v1204, %v220
    %v1206 = vadd.f32 %v1205, %v243
    %v1207 = vadd.f32 %v1206, %v266
    %v1208 = vadd.f32 %v1207, %v289
    %v1209 = vadd.f32 %v1208, %v312
    %1210 = vadd.xlane.f32.xlu0 %v1209
    %v1211 = vpop.xlane.xlu0 %1210
    %v1212 = vadd.f32 %v154, %v177
    %v1213 = vadd.f32 %v1212, %v200
    %v1214 = vadd.f32 %v1213, %v223
    %v1215 = vadd.f32 %v1214, %v246
    %v1216 = vadd.f32 %v1215, %v269
    %v1217 = vadd.f32 %v1216, %v292
    %v1218 = vadd.f32 %v1217, %v315
    %1219 = vadd.xlane.f32.xlu0 %v1218
    %v1220 = vpop.xlane.xlu0 %1219
    %v1221 = vmul.f32 %v151, %v151
    %v1222 = vmul.f32 %v174, %v174
    %v1223 = vmul.f32 %v197, %v197
    %v1224 = vmul.f32 %v220, %v220
    %v1225 = vmul.f32 %v243, %v243
    %v1226 = vmul.f32 %v266, %v266
    %v1227 = vmul.f32 %v289, %v289
    %v1228 = vmul.f32 %v312, %v312
    %v1229 = vmul.f32 %v154, %v154
    %v1230 = vmul.f32 %v177, %v177
    %v1231 = vmul.f32 %v200, %v200
    %v1232 = vmul.f32 %v223, %v223
    %v1233 = vmul.f32 %v246, %v246
    %v1234 = vmul.f32 %v269, %v269
    %v1235 = vmul.f32 %v292, %v292
    %v1236 = vmul.f32 %v315, %v315
    %v1237 = vadd.f32 %v1221, %v1222
    %v1238 = vadd.f32 %v1237, %v1223
    %v1239 = vadd.f32 %v1238, %v1224
    %v1240 = vadd.f32 %v1239, %v1225
    %v1241 = vadd.f32 %v1240, %v1226
    %v1242 = vadd.f32 %v1241, %v1227
    %v1243 = vadd.f32 %v1242, %v1228
    %1244 = vadd.xlane.f32.xlu0 %v1243
    %v1245 = vpop.xlane.xlu0 %1244
    %v1246 = vadd.f32 %v1229, %v1230
    %v1247 = vadd.f32 %v1246, %v1231
    %v1248 = vadd.f32 %v1247, %v1232
    %v1249 = vadd.f32 %v1248, %v1233
    %v1250 = vadd.f32 %v1249, %v1234
    %v1251 = vadd.f32 %v1250, %v1235
    %v1252 = vadd.f32 %v1251, %v1236
    %1253 = vadd.xlane.f32.xlu0 %v1252
    %v1254 = vpop.xlane.xlu0 %1253
    %v1255 = vmul.f32 %v1211, 0.0009765625
    %v1256 = vmul.f32 %v1220, 0.0009765625
    %v1257 = vmul.f32 %v1211, %v1255
    %v1258 = vmul.f32 %v1220, %v1256
    %v1259 = vsub.f32 %v1245, %v1257
    %v1260 = vsub.f32 %v1254, %v1258
    %v1261 = vmul.f32 %v1259, 0.0009775171
    %v1262 = vmul.f32 %v1260, 0.0009775171
    %v1263 = vmax.f32 %v1261, 0.0
    %v1264 = vmax.f32 %v1262, 0.0
    %v1265 = vrsqrt.pop %v1263
    %v1266 = vmul.f32 %v1265, %v1263
    %v1267 = vmul.f32 %v1266, %v1265
    %v1268 = vmul.f32 0.5, %v1267
    %v1269 = vsub.f32 1.5, %v1268
    %v1270 = vmul.f32 %v1265, %v1269
    %v1271 = vmul.f32 %v1263, %v1270
    %vm1272 = vcmp.eq.f32.partialorder %v1263, inf
    %v1273 = vsel %vm1272, %v1263, %v1271
    %vm1274 = vcmp.eq.f32.partialorder %v1263, 0.0
    %v1275 = vand.u32 %v1263, 2147483648
    %v1276 = vsel %vm1274, %v1275, %v1273
    %v1277 = vrsqrt.pop %v1264
    %v1278 = vmul.f32 %v1277, %v1264
    %v1279 = vmul.f32 %v1278, %v1277
    %v1280 = vmul.f32 0.5, %v1279
    %v1281 = vsub.f32 1.5, %v1280
    %v1282 = vmul.f32 %v1277, %v1281
    %v1283 = vmul.f32 %v1264, %v1282
    %vm1284 = vcmp.eq.f32.partialorder %v1264, inf
    %v1285 = vsel %vm1284, %v1264, %v1283
    %vm1286 = vcmp.eq.f32.partialorder %v1264, 0.0
    %v1287 = vand.u32 %v1264, 2147483648
    %v1288 = vsel %vm1286, %v1287, %v1285
    %v1289 = vadd.f32 %v1276, 1e-07
    %v1290 = vadd.f32 %v1288, 1e-07
    %v1291 = vrcp.pop %v1289
    %v1292 = vrcp.pop %v1290
    %v1293 = vmul.f32 %v1291, 0.25
    %v1294 = vmul.f32 %v1292, 0.25
    %v1295 = vsub.f32 %v151, %v1255
    %v1296 = vsub.f32 %v174, %v1255
    %v1297 = vsub.f32 %v197, %v1255
    %v1298 = vsub.f32 %v220, %v1255
    %v1299 = vsub.f32 %v243, %v1255
    %v1300 = vsub.f32 %v266, %v1255
    %v1301 = vsub.f32 %v289, %v1255
    %v1302 = vsub.f32 %v312, %v1255
    %v1303 = vsub.f32 %v154, %v1256
    %v1304 = vsub.f32 %v177, %v1256
    %v1305 = vsub.f32 %v200, %v1256
    %v1306 = vsub.f32 %v223, %v1256
    %v1307 = vsub.f32 %v246, %v1256
    %v1308 = vsub.f32 %v269, %v1256
    %v1309 = vsub.f32 %v292, %v1256
    %v1310 = vsub.f32 %v315, %v1256
    %v1311 = vmul.f32 %v1295, %v1293
    %v1312 = vmul.f32 %v1296, %v1293
    %v1313 = vmul.f32 %v1297, %v1293
    %v1314 = vmul.f32 %v1298, %v1293
    %v1315 = vmul.f32 %v1299, %v1293
    %v1316 = vmul.f32 %v1300, %v1293
    %v1317 = vmul.f32 %v1301, %v1293
    %v1318 = vmul.f32 %v1302, %v1293
    %v1319 = vmul.f32 %v1303, %v1294
    %v1320 = vmul.f32 %v1304, %v1294
    %v1321 = vmul.f32 %v1305, %v1294
    %v1322 = vmul.f32 %v1306, %v1294
    %v1323 = vmul.f32 %v1307, %v1294
    %v1324 = vmul.f32 %v1308, %v1294
    %v1325 = vmul.f32 %v1309, %v1294
    %v1326 = vmul.f32 %v1310, %v1294
    %v1327 = vmax.f32 %v1187, %v1189
    %v1328 = vmax.f32 %v1188, %v1190
    %v1329 = vmax.f32 %v1327, %v1191
    %v1330 = vmax.f32 %v1328, %v1192
    %v1331 = vmax.f32 %v1329, %v1193
    %v1332 = vmax.f32 %v1330, %v1194
    %v1333 = vmax.f32 %v1331, %v1332
    %1334 = vmax.xlane.f32.xlu0 %v1333
    %v1335 = vpop.xlane.xlu0 %1334
    %v1336 = vmax.f32 %v1195, %v1197
    %v1337 = vmax.f32 %v1196, %v1198
    %v1338 = vmax.f32 %v1336, %v1199
    %v1339 = vmax.f32 %v1337, %v1200
    %v1340 = vmax.f32 %v1338, %v1201
    %v1341 = vmax.f32 %v1339, %v1202
    %v1342 = vmax.f32 %v1340, %v1341
    %1343 = vmax.xlane.f32.xlu0 %v1342
    %v1344 = vpop.xlane.xlu0 %1343
    %v1345 = vsub.f32 %v1187, %v1335
    %v1346 = vsub.f32 %v1188, %v1335
    %v1347 = vsub.f32 %v1189, %v1335
    %v1348 = vsub.f32 %v1190, %v1335
    %v1349 = vsub.f32 %v1191, %v1335
    %v1350 = vsub.f32 %v1192, %v1335
    %v1351 = vsub.f32 %v1193, %v1335
    %v1352 = vsub.f32 %v1194, %v1335
    %v1353 = vsub.f32 %v1195, %v1344
    %v1354 = vsub.f32 %v1196, %v1344
    %v1355 = vsub.f32 %v1197, %v1344
    %v1356 = vsub.f32 %v1198, %v1344
    %v1357 = vsub.f32 %v1199, %v1344
    %v1358 = vsub.f32 %v1200, %v1344
    %v1359 = vsub.f32 %v1201, %v1344
    %v1360 = vsub.f32 %v1202, %v1344
    %v1361 = vmul.f32 %v1345, 1.442695
    %v1362 = vpow.pop %v1361
    %v1363 = vmul.f32 %v1346, 1.442695
    %v1364 = vpow.pop %v1363
    %v1365 = vmul.f32 %v1347, 1.442695
    %v1366 = vpow.pop %v1365
    %v1367 = vmul.f32 %v1348, 1.442695
    %v1368 = vpow.pop %v1367
    %v1369 = vmul.f32 %v1349, 1.442695
    %v1370 = vpow.pop %v1369
    %v1371 = vmul.f32 %v1350, 1.442695
    %v1372 = vpow.pop %v1371
    %v1373 = vmul.f32 %v1351, 1.442695
    %v1374 = vpow.pop %v1373
    %v1375 = vmul.f32 %v1352, 1.442695
    %v1376 = vpow.pop %v1375
    %v1377 = vmul.f32 %v1353, 1.442695
    %v1378 = vpow.pop %v1377
    %v1379 = vmul.f32 %v1354, 1.442695
    %v1380 = vpow.pop %v1379
    %v1381 = vmul.f32 %v1355, 1.442695
    %v1382 = vpow.pop %v1381
    %v1383 = vmul.f32 %v1356, 1.442695
    %v1384 = vpow.pop %v1383
    %v1385 = vmul.f32 %v1357, 1.442695
    %v1386 = vpow.pop %v1385
    %v1387 = vmul.f32 %v1358, 1.442695
    %v1388 = vpow.pop %v1387
    %v1389 = vmul.f32 %v1359, 1.442695
    %v1390 = vpow.pop %v1389
    %v1391 = vmul.f32 %v1360, 1.442695
    %v1392 = vpow.pop %v1391
    %v1393 = vadd.f32 %v1362, %v1364
    %v1394 = vadd.f32 %v1393, %v1366
    %v1395 = vadd.f32 %v1394, %v1368
    %v1396 = vadd.f32 %v1395, %v1370
    %v1397 = vadd.f32 %v1396, %v1372
    %v1398 = vadd.f32 %v1397, %v1374
    %v1399 = vadd.f32 %v1398, %v1376
    %1400 = vadd.xlane.f32.xlu0 %v1399
    %v1401 = vpop.xlane.xlu0 %1400
    %v1402 = vadd.f32 %v1378, %v1380
    %v1403 = vadd.f32 %v1402, %v1382
    %v1404 = vadd.f32 %v1403, %v1384
    %v1405 = vadd.f32 %v1404, %v1386
    %v1406 = vadd.f32 %v1405, %v1388
    %v1407 = vadd.f32 %v1406, %v1390
    %v1408 = vadd.f32 %v1407, %v1392
    %1409 = vadd.xlane.f32.xlu0 %v1408
    %v1410 = vpop.xlane.xlu0 %1409
    %v1411 = vlog2.pop %v1401
    %v1412 = vmul.f32 %v1411, 0.6931472
    %v1413 = vlog2.pop %v1410
    %v1414 = vmul.f32 %v1413, 0.6931472
    %v1415 = vsub.f32 %v1345, %v1412
    %v1416 = vsub.f32 %v1346, %v1412
    %v1417 = vsub.f32 %v1347, %v1412
    %v1418 = vsub.f32 %v1348, %v1412
    %v1419 = vsub.f32 %v1349, %v1412
    %v1420 = vsub.f32 %v1350, %v1412
    %v1421 = vsub.f32 %v1351, %v1412
    %v1422 = vsub.f32 %v1352, %v1412
    %v1423 = vsub.f32 %v1353, %v1414
    %v1424 = vsub.f32 %v1354, %v1414
    %v1425 = vsub.f32 %v1355, %v1414
    %v1426 = vsub.f32 %v1356, %v1414
    %v1427 = vsub.f32 %v1357, %v1414
    %v1428 = vsub.f32 %v1358, %v1414
    %v1429 = vsub.f32 %v1359, %v1414
    %v1430 = vsub.f32 %v1360, %v1414
    %v1431 = vmax.f32 %v1311, %v1313
    %v1432 = vmax.f32 %v1312, %v1314
    %v1433 = vmax.f32 %v1431, %v1315
    %v1434 = vmax.f32 %v1432, %v1316
    %v1435 = vmax.f32 %v1433, %v1317
    %v1436 = vmax.f32 %v1434, %v1318
    %v1437 = vmax.f32 %v1435, %v1436
    %1438 = vmax.xlane.f32.xlu0 %v1437
    %v1439 = vpop.xlane.xlu0 %1438
    %v1440 = vmax.f32 %v1319, %v1321
    %v1441 = vmax.f32 %v1320, %v1322
    %v1442 = vmax.f32 %v1440, %v1323
    %v1443 = vmax.f32 %v1441, %v1324
    %v1444 = vmax.f32 %v1442, %v1325
    %v1445 = vmax.f32 %v1443, %v1326
    %v1446 = vmax.f32 %v1444, %v1445
    %1447 = vmax.xlane.f32.xlu0 %v1446
    %v1448 = vpop.xlane.xlu0 %1447
    %v1449 = vsub.f32 %v1311, %v1439
    %v1450 = vsub.f32 %v1312, %v1439
    %v1451 = vsub.f32 %v1313, %v1439
    %v1452 = vsub.f32 %v1314, %v1439
    %v1453 = vsub.f32 %v1315, %v1439
    %v1454 = vsub.f32 %v1316, %v1439
    %v1455 = vsub.f32 %v1317, %v1439
    %v1456 = vsub.f32 %v1318, %v1439
    %v1457 = vsub.f32 %v1319, %v1448
    %v1458 = vsub.f32 %v1320, %v1448
    %v1459 = vsub.f32 %v1321, %v1448
    %v1460 = vsub.f32 %v1322, %v1448
    %v1461 = vsub.f32 %v1323, %v1448
    %v1462 = vsub.f32 %v1324, %v1448
    %v1463 = vsub.f32 %v1325, %v1448
    %v1464 = vsub.f32 %v1326, %v1448
    %v1465 = vmul.f32 %v1449, 1.442695
    %v1466 = vpow.pop %v1465
    %v1467 = vmul.f32 %v1450, 1.442695
    %v1468 = vpow.pop %v1467
    %v1469 = vmul.f32 %v1451, 1.442695
    %v1470 = vpow.pop %v1469
    %v1471 = vmul.f32 %v1452, 1.442695
    %v1472 = vpow.pop %v1471
    %v1473 = vmul.f32 %v1453, 1.442695
    %v1474 = vpow.pop %v1473
    %v1475 = vmul.f32 %v1454, 1.442695
    %v1476 = vpow.pop %v1475
    %v1477 = vmul.f32 %v1455, 1.442695
    %v1478 = vpow.pop %v1477
    %v1479 = vmul.f32 %v1456, 1.442695
    %v1480 = vpow.pop %v1479
    %v1481 = vmul.f32 %v1457, 1.442695
    %v1482 = vpow.pop %v1481
    %v1483 = vmul.f32 %v1458, 1.442695
    %v1484 = vpow.pop %v1483
    %v1485 = vmul.f32 %v1459, 1.442695
    %v1486 = vpow.pop %v1485
    %v1487 = vmul.f32 %v1460, 1.442695
    %v1488 = vpow.pop %v1487
    %v1489 = vmul.f32 %v1461, 1.442695
    %v1490 = vpow.pop %v1489
    %v1491 = vmul.f32 %v1462, 1.442695
    %v1492 = vpow.pop %v1491
    %v1493 = vmul.f32 %v1463, 1.442695
    %v1494 = vpow.pop %v1493
    %v1495 = vmul.f32 %v1464, 1.442695
    %v1496 = vpow.pop %v1495
    %v1497 = vadd.f32 %v1466, %v1468
    %v1498 = vadd.f32 %v1497, %v1470
    %v1499 = vadd.f32 %v1498, %v1472
    %v1500 = vadd.f32 %v1499, %v1474
    %v1501 = vadd.f32 %v1500, %v1476
    %v1502 = vadd.f32 %v1501, %v1478
    %v1503 = vadd.f32 %v1502, %v1480
    %1504 = vadd.xlane.f32.xlu0 %v1503
    %v1505 = vpop.xlane.xlu0 %1504
    %v1506 = vadd.f32 %v1482, %v1484
    %v1507 = vadd.f32 %v1506, %v1486
    %v1508 = vadd.f32 %v1507, %v1488
    %v1509 = vadd.f32 %v1508, %v1490
    %v1510 = vadd.f32 %v1509, %v1492
    %v1511 = vadd.f32 %v1510, %v1494
    %v1512 = vadd.f32 %v1511, %v1496
    %1513 = vadd.xlane.f32.xlu0 %v1512
    %v1514 = vpop.xlane.xlu0 %1513
    %v1515 = vrcp.pop %v1505
    %v1516 = vrcp.pop %v1514
    %v1517 = vmul.f32 %v1466, %v1515
    %v1518 = vmul.f32 %v1468, %v1515
    %v1519 = vmul.f32 %v1470, %v1515
    %v1520 = vmul.f32 %v1472, %v1515
    %v1521 = vmul.f32 %v1474, %v1515
    %v1522 = vmul.f32 %v1476, %v1515
    %v1523 = vmul.f32 %v1478, %v1515
    %v1524 = vmul.f32 %v1480, %v1515
    %v1525 = vmul.f32 %v1482, %v1516
    %v1526 = vmul.f32 %v1484, %v1516
    %v1527 = vmul.f32 %v1486, %v1516
    %v1528 = vmul.f32 %v1488, %v1516
    %v1529 = vmul.f32 %v1490, %v1516
    %v1530 = vmul.f32 %v1492, %v1516
    %v1531 = vmul.f32 %v1494, %v1516
    %v1532 = vmul.f32 %v1496, %v1516
    %v1533 = vlog2.pop %v1505
    %v1534 = vmul.f32 %v1533, 0.6931472
    %v1535 = vlog2.pop %v1514
    %v1536 = vmul.f32 %v1535, 0.6931472
    %v1537 = vsub.f32 %v1449, %v1534
    %v1538 = vsub.f32 %v1450, %v1534
    %v1539 = vsub.f32 %v1451, %v1534
    %v1540 = vsub.f32 %v1452, %v1534
    %v1541 = vsub.f32 %v1453, %v1534
    %v1542 = vsub.f32 %v1454, %v1534
    %v1543 = vsub.f32 %v1455, %v1534
    %v1544 = vsub.f32 %v1456, %v1534
    %v1545 = vsub.f32 %v1457, %v1536
    %v1546 = vsub.f32 %v1458, %v1536
    %v1547 = vsub.f32 %v1459, %v1536
    %v1548 = vsub.f32 %v1460, %v1536
    %v1549 = vsub.f32 %v1461, %v1536
    %v1550 = vsub.f32 %v1462, %v1536
    %v1551 = vsub.f32 %v1463, %v1536
    %v1552 = vsub.f32 %v1464, %v1536
    %v1553 = vsub.f32 %v1537, %v1415
    %v1554 = vsub.f32 %v1538, %v1416
    %v1555 = vsub.f32 %v1539, %v1417
    %v1556 = vsub.f32 %v1540, %v1418
    %v1557 = vsub.f32 %v1541, %v1419
    %v1558 = vsub.f32 %v1542, %v1420
    %v1559 = vsub.f32 %v1543, %v1421
    %v1560 = vsub.f32 %v1544, %v1422
    %v1561 = vsub.f32 %v1545, %v1423
    %v1562 = vsub.f32 %v1546, %v1424
    %v1563 = vsub.f32 %v1547, %v1425
    %v1564 = vsub.f32 %v1548, %v1426
    %v1565 = vsub.f32 %v1549, %v1427
    %v1566 = vsub.f32 %v1550, %v1428
    %v1567 = vsub.f32 %v1551, %v1429
    %v1568 = vsub.f32 %v1552, %v1430
    %v1569 = vmul.f32 %v1517, %v1553
    %v1570 = vmul.f32 %v1518, %v1554
    %v1571 = vmul.f32 %v1519, %v1555
    %v1572 = vmul.f32 %v1520, %v1556
    %v1573 = vmul.f32 %v1521, %v1557
    %v1574 = vmul.f32 %v1522, %v1558
    %v1575 = vmul.f32 %v1523, %v1559
    %v1576 = vmul.f32 %v1524, %v1560
    %v1577 = vmul.f32 %v1525, %v1561
    %v1578 = vmul.f32 %v1526, %v1562
    %v1579 = vmul.f32 %v1527, %v1563
    %v1580 = vmul.f32 %v1528, %v1564
    %v1581 = vmul.f32 %v1529, %v1565
    %v1582 = vmul.f32 %v1530, %v1566
    %v1583 = vmul.f32 %v1531, %v1567
    %v1584 = vmul.f32 %v1532, %v1568
    %v1585 = vadd.f32 %v1569, %v1570
    %v1586 = vadd.f32 %v1585, %v1571
    %v1587 = vadd.f32 %v1586, %v1572
    %v1588 = vadd.f32 %v1587, %v1573
    %v1589 = vadd.f32 %v1588, %v1574
    %v1590 = vadd.f32 %v1589, %v1575
    %v1591 = vadd.f32 %v1590, %v1576
    %1592 = vadd.xlane.f32.xlu0 %v1591
    %v1593 = vpop.xlane.xlu0 %1592
    %v1594 = vadd.f32 %v1577, %v1578
    %v1595 = vadd.f32 %v1594, %v1579
    %v1596 = vadd.f32 %v1595, %v1580
    %v1597 = vadd.f32 %v1596, %v1581
    %v1598 = vadd.f32 %v1597, %v1582
    %v1599 = vadd.f32 %v1598, %v1583
    %v1600 = vadd.f32 %v1599, %v1584
    %1601 = vadd.xlane.f32.xlu0 %v1600
    %v1602 = vpop.xlane.xlu0 %1601
    %v1603 = vld [vmem:[%s8] sm:$0xff]
    %v1604 = vld [vmem:[%s8 + $0x8] sm:$0xff]
    %v1605 = vmul.f32 %v1603, %v1593
    %v1606 = vmul.f32 %v1604, %v1602
    %1609 = vrot.lane.b32.xlu0 %v1605, 127
    %v1610 = vpop.permute.xlu0 %1609
    %1611 = vrot.lane.b32.xlu0 %v1606, 127
    %v1612 = vpop.permute.xlu0 %1611
    %v1615 = vsel %vm440, %v1610, 0.0
    %v1616 = vsel %vm440, %v1612, 0.0
    %v1617 = vadd.f32 %v1615, %v1616
    %1618 = vadd.xlane.f32.xlu0 %v1617
    %v1619 = vpop.xlane.xlu0 %1618
    %v1620 = vrot.slane %v1619, 4
    %v1621 = vadd.f32 %v1619, %v1620
    %v1622 = vrot.slane %v1621, 2
    %v1623 = vadd.f32 %v1621, %v1622
    %v1624 = vrot.slane %v1623, 1
    %v1625 = vadd.f32 %v1623, %v1624
    %s1626 = vtos %v1625
    %s1627 = scalar_lea.smem [#allocation4], 0
    %1628 = sst [smem:[%s1627]] %s1626
    // Predicated region
    $region38: #{_forward_train.1} parent=1 // pred_check
      _
    $region39: #{_forward_train.1} parent=1 // pred_check_branch
      %1630 = sbr.rel (0) target = $region41
    $region40: #{_forward_train.1} parent=1 // pred_region
      %1632 = vsyncadd [#allocation3], 0
      %s1634 = sshll.u32 %s9, 4
      %s1635 = int_to_ptr.hbm [resolvable:$true] %s1634
      %1637 = dma.smem_to_hbm [#allocation2], 16, %s1635, [#allocation3]
    $region41: #{_forward_train.1} parent=1 // pred_fallthru
      _
    // Predicated region
    $region42: #{_forward_train.1} parent=1 // pred_check
      _
    $region43: #{_forward_train.1} parent=1 // pred_check_branch
      %1639 = sbr.rel (0) target = $region45
    $region44: #{_forward_train.1} parent=1 // pred_region
      %1641 = vsyncadd [#allocation5], 0
      %s1643 = sshll.u32 %s10, 4
      %s1644 = int_to_ptr.hbm [resolvable:$true] %s1643
      %1646 = dma.smem_to_hbm [#allocation4], 16, %s1644, [#allocation5]
    $region45: #{_forward_train.1} parent=1 // pred_fallthru
      _
    // Predicated region
    $region46: #{_forward_train.1} parent=1 // pred_check
      _
    $region47: #{_forward_train.1} parent=1 // pred_check_branch
      %1648 = sbr.rel (0) target = $region49
    $region48: #{_forward_train.1} parent=1 // pred_region
      %1650 = dma.done [#allocation3], 16
    $region49: #{_forward_train.1} parent=1 // pred_fallthru
      _
    // Predicated region
    $region50: #{_forward_train.1} parent=1 // pred_check
      _
    $region51: #{_forward_train.1} parent=1 // pred_check_branch
      %1652 = sbr.rel (0) target = $region53
    $region52: #{_forward_train.1} parent=1 // pred_region
      %1654 = dma.done [#allocation5], 16
    $region53: #{_forward_train.1} parent=1 // pred_fallthru
      _
    %1655 = sfence
    %1656 = vsyncpa [#allocation3], 1
    %1657 = vsyncpa [#allocation5], 1

</llo_original>
